<compile_context>
chip_gen: v7x
topology: tpu7x:2x2x1
jax: 0.10.0
libtpu: 0.0.40
codegen_flags: <defaults>
</compile_context>

<pallas_src>
import functools

import numpy as np

import jax
import jax.numpy as jnp
from jax.experimental import pallas as pl
from jax.experimental.pallas import tpu as pltpu


def inverted_residual_kernel(x_ref, wpw_ref, s1_ref, b1_ref, wdw_ref, mask_ref,
                             s2_ref, b2_ref, wpwl_ref, s3_ref, b3_ref, o_ref,
                             *, W):
    # x_ref block: (1, Cin, P) with P = H*W (pixels on the 128-lane axis).
    P = x_ref.shape[2]

    x = x_ref[0]                                            # (Cin, P)

    # --- conv_pw: 1x1 expansion == (Cmid, Cin) @ (Cin, P); + bn1 + relu -----
    h = jnp.dot(wpw_ref[...], x, preferred_element_type=jnp.float32)
    h = jnp.maximum(h * s1_ref[...] + b1_ref[...], 0.0)     # (Cmid, P)

    # --- conv_dw: 3x3 depthwise, stride 1, 'same' zero padding --------------
    # 9 in-register shifted taps along the flattened pixel axis. Out-of-image
    # taps (row/col boundaries and the circular wrap of the roll) are zeroed
    # by the precomputed per-tap masks.
    wdw = wdw_ref[...]                                      # (Cmid, 9)
    masks = mask_ref[...]                                   # (9, P)
    acc = jnp.zeros_like(h)
    for kh in range(3):                                     # static unroll
        for kw in range(3):
            dh, dw = kh - 1, kw - 1
            k = kh * 3 + kw
            s = dh * W + dw                                 # pixel offset of tap
            if s == 0:
                tap = h                                     # center tap, no mask
            else:
                # tap[:, p] = h[:, p + s] (wrap positions masked off below)
                tap = pltpu.roll(h, (-s) % P, axis=1) * masks[k:k + 1, :]
            acc = acc + tap * wdw[:, k:k + 1]
    h2 = jnp.maximum(acc * s2_ref[...] + b2_ref[...], 0.0)  # bn2 + relu

    # se_layer=None -> nn.Identity(), nothing to do.

    # --- conv_pwl: 1x1 linear projection + bn3 -------------------------------
    h3 = jnp.dot(wpwl_ref[...], h2, preferred_element_type=jnp.float32)
    h3 = h3 * s3_ref[...] + b3_ref[...]                     # (Cout, P)

    # --- residual (in_chs == out_chs, stride == 1, drop_path_rate == 0) -----
    o_ref[0] = (h3 + x).astype(o_ref.dtype)


def _dw_validity_masks(H, W):
    """(9, H*W) float32 masks: 1 where the (dh, dw) tap lands inside the image."""
    P = H * W
    rows = np.arange(P) // W
    cols = np.arange(P) % W
    m = np.zeros((9, P), np.float32)
    for kh in range(3):
        for kw in range(3):
            dh, dw = kh - 1, kw - 1
            ok = ((rows + dh >= 0) & (rows + dh < H) &
                  (cols + dw >= 0) & (cols + dw < W))
            m[kh * 3 + kw] = ok
    return jnp.asarray(m)


def inverted_residual(x_nchw, p):
    """x_nchw: (N, Cin, H, W) float32; p: dict of folded parameters."""
    N, Cin, H, W = x_nchw.shape
    P = H * W
    Cmid = p["w_pw"].shape[0]
    Cout = p["w_pwl"].shape[0]
    assert Cin == Cout, "residual add requires in_chs == out_chs (stride == 1)"

    # Contiguous (free) reshape: NCHW -> (N, C, H*W). No transposes.
    x = x_nchw.reshape(N, Cin, P).astype(jnp.float32)
    masks = _dw_validity_masks(H, W)                        # (9, P)

    full = lambda shape: pl.BlockSpec(shape, lambda n: (0,) * len(shape))

    out = pl.pallas_call(
        functools.partial(inverted_residual_kernel, W=W),
        out_shape=jax.ShapeDtypeStruct((N, Cout, P), jnp.float32),
        grid=(N,),
        in_specs=[
            pl.BlockSpec((1, Cin, P), lambda n: (n, 0, 0)),  # x (per image)
            full((Cmid, Cin)),                               # w_pw
            full((Cmid, 1)), full((Cmid, 1)),                # bn1 scale, bias
            full((Cmid, 9)),                                 # w_dw (taps kh*3+kw)
            full((9, P)),                                    # depthwise masks
            full((Cmid, 1)), full((Cmid, 1)),                # bn2 scale, bias
            full((Cout, Cmid)),                              # w_pwl
            full((Cout, 1)), full((Cout, 1)),                # bn3 scale, bias
        ],
        out_specs=pl.BlockSpec((1, Cout, P), lambda n: (n, 0, 0)),
        compiler_params=pltpu.CompilerParams(
            dimension_semantics=("parallel",)),              # 2 TCs on v7x
    )(x, p["w_pw"], p["s1"], p["b1"], p["w_dw"], masks,
      p["s2"], p["b2"], p["w_pwl"], p["s3"], p["b3"])

    return out.reshape(N, Cout, H, W)                        # free reshape back


def ref_inverted_residual(x_nchw, p):
    """Pure-JAX reference using lax.conv in NCHW (for sanity checking)."""
    dn = ("NCHW", "OIHW", "NCHW")
    hp = jax.lax.Precision.HIGHEST
    Cmid = p["w_pw"].shape[0]
    Cout = p["w_pwl"].shape[0]
    bc = lambda v, c: v.reshape(1, c, 1, 1)

    x = x_nchw
    h = jax.lax.conv_general_dilated(x, p["w_pw"][:, :, None, None], (1, 1),
                                     "SAME", dimension_numbers=dn, precision=hp)
    h = jnp.maximum(h * bc(p["s1"], Cmid) + bc(p["b1"], Cmid), 0.0)
    h = jax.lax.conv_general_dilated(h, p["w_dw"].reshape(Cmid, 1, 3, 3), (1, 1),
                                     "SAME", dimension_numbers=dn,
                                     feature_group_count=Cmid, precision=hp)
    h = jnp.maximum(h * bc(p["s2"], Cmid) + bc(p["b2"], Cmid), 0.0)
    h = jax.lax.conv_general_dilated(h, p["w_pwl"][:, :, None, None], (1, 1),
                                     "SAME", dimension_numbers=dn, precision=hp)
    h = h * bc(p["s3"], Cout) + bc(p["b3"], Cout) + x
    return h


def make_params(key, Cin, Cmid, Cout):
    ks = jax.random.split(key, 15)

    def bn_fold(kg, kb, km, kv, c):
        gamma = 1.0 + 0.1 * jax.random.normal(kg, (c,), jnp.float32)
        beta = 0.1 * jax.random.normal(kb, (c,), jnp.float32)
        mean = 0.1 * jax.random.normal(km, (c,), jnp.float32)
        var = jnp.abs(jax.random.normal(kv, (c,), jnp.float32)) + 0.5
        s = gamma / jnp.sqrt(var + 1e-5)
        b = beta - mean * s
        return s.reshape(c, 1), b.reshape(c, 1)

    # conv weights (bias-free, as in timm conv+BN blocks), PyTorch orientation:
    #   w_pw  : (Cmid, Cin)   <-> torch (Cmid, Cin, 1, 1)
    #   w_dw  : (Cmid, 9)     <-> torch (Cmid, 1, 3, 3), groups = Cmid
    #   w_pwl : (Cout, Cmid)  <-> torch (Cout, Cmid, 1, 1)
    w_pw = jax.random.normal(ks[0], (Cmid, Cin), jnp.float32) * (2.0 / Cin) ** 0.5
    w_dw = jax.random.normal(ks[1], (Cmid, 9), jnp.float32) * (2.0 / 9.0) ** 0.5
    w_pwl = jax.random.normal(ks[2], (Cout, Cmid), jnp.float32) * (1.0 / Cmid) ** 0.5
    s1, b1 = bn_fold(ks[3], ks[4], ks[5], ks[6], Cmid)
    s2, b2 = bn_fold(ks[7], ks[8], ks[9], ks[10], Cmid)
    s3, b3 = bn_fold(ks[11], ks[12], ks[13], ks[14], Cout)
    return dict(w_pw=w_pw, w_dw=w_dw, w_pwl=w_pwl,
                s1=s1, b1=b1, s2=s2, b2=b2, s3=s3, b3=b3)


if __name__ == "__main__":
    key = jax.random.PRNGKey(0)
    kx, kp = jax.random.split(key)

    # InvertedResidual(in_chs=8, out_chs=8, dw_kernel_size=3, stride=1,
    #                  exp_ratio=4.0)  ->  mid_chs = 32, has_residual = True
    N, Cin, H, W = 2, 8, 16, 16
    Cmid, Cout = 32, 8

    x = jax.random.normal(kx, (N, Cin, H, W), jnp.float32)
    params = make_params(kp, Cin, Cmid, Cout)

    out = jax.block_until_ready(inverted_residual(x, params))
    ref = jax.block_until_ready(ref_inverted_residual(x, params))

    assert out.shape == (N, Cout, H, W)
    max_err = float(jnp.max(jnp.abs(out - ref)))
    assert max_err < 2e-2, f"mismatch vs reference: {max_err}"

    print("KERNEL_OK")
</pallas_src>

<mosaic_0001>
module attributes {stable_mosaic.version = 11 : i64} {
  func.func @inverted_residual_kernel(%arg0: i32, %arg1: memref<1x8x256xf32, #tpu.memory_space<vmem>>, %arg2: memref<32x8xf32, #tpu.memory_space<vmem>>, %arg3: memref<32x1xf32, #tpu.memory_space<vmem>>, %arg4: memref<32x1xf32, #tpu.memory_space<vmem>>, %arg5: memref<32x9xf32, #tpu.memory_space<vmem>>, %arg6: memref<9x256xf32, #tpu.memory_space<vmem>>, %arg7: memref<32x1xf32, #tpu.memory_space<vmem>>, %arg8: memref<32x1xf32, #tpu.memory_space<vmem>>, %arg9: memref<8x32xf32, #tpu.memory_space<vmem>>, %arg10: memref<8x1xf32, #tpu.memory_space<vmem>>, %arg11: memref<8x1xf32, #tpu.memory_space<vmem>>, %arg12: memref<1x8x256xf32, #tpu.memory_space<vmem>>) attributes {dimension_semantics = [#tpu.dimension_semantics<parallel>], iteration_bounds = array<i64: 2>, scalar_prefetch = 0 : i64, scratch_operands = 0 : i64, tpu.core_type = #tpu.core_type<tc>, window_params = [{transform_indices = @transform_0, window_bounds = array<i64: 1, 8, 256>}, {pipeline_mode = #tpu.pipeline_mode<synchronous>, transform_indices = @transform_1, window_bounds = array<i64: 32, 8>}, {pipeline_mode = #tpu.pipeline_mode<synchronous>, transform_indices = @transform_2, window_bounds = array<i64: 32, 1>}, {pipeline_mode = #tpu.pipeline_mode<synchronous>, transform_indices = @transform_3, window_bounds = array<i64: 32, 1>}, {pipeline_mode = #tpu.pipeline_mode<synchronous>, transform_indices = @transform_4, window_bounds = array<i64: 32, 9>}, {pipeline_mode = #tpu.pipeline_mode<synchronous>, transform_indices = @transform_5, window_bounds = array<i64: 9, 256>}, {pipeline_mode = #tpu.pipeline_mode<synchronous>, transform_indices = @transform_6, window_bounds = array<i64: 32, 1>}, {pipeline_mode = #tpu.pipeline_mode<synchronous>, transform_indices = @transform_7, window_bounds = array<i64: 32, 1>}, {pipeline_mode = #tpu.pipeline_mode<synchronous>, transform_indices = @transform_8, window_bounds = array<i64: 8, 32>}, {pipeline_mode = #tpu.pipeline_mode<synchronous>, transform_indices = @transform_9, window_bounds = array<i64: 8, 1>}, {pipeline_mode = #tpu.pipeline_mode<synchronous>, transform_indices = @transform_10, window_bounds = array<i64: 8, 1>}, {transform_indices = @transform_11, window_bounds = array<i64: 1, 8, 256>}]} {
    %c0 = arith.constant 0 : index
    %c0_0 = arith.constant 0 : index
    %c0_1 = arith.constant 0 : index
    %0 = vector.load %arg1[%c0, %c0_0, %c0_1] : memref<1x8x256xf32, #tpu.memory_space<vmem>>, vector<1x8x256xf32>
    %1 = vector.shape_cast %0 : vector<1x8x256xf32> to vector<8x256xf32>
    %c0_2 = arith.constant 0 : index
    %c0_3 = arith.constant 0 : index
    %2 = vector.load %arg2[%c0_2, %c0_3] : memref<32x8xf32, #tpu.memory_space<vmem>>, vector<32x8xf32>
    %cst = arith.constant dense<0.000000e+00> : vector<32x256xf32>
    %3 = tpu.matmul %2, %1, %cst {dimension_numbers = #tpu.dot_dimension_numbers<[1], [0], [0], [1], [0, 0, 1, 1], [], []>} : vector<32x8xf32>, vector<8x256xf32>, vector<32x256xf32> -> vector<32x256xf32>
    %c0_4 = arith.constant 0 : index
    %c0_5 = arith.constant 0 : index
    %4 = vector.load %arg3[%c0_4, %c0_5] : memref<32x1xf32, #tpu.memory_space<vmem>>, vector<32x1xf32>
    %5 = vector.broadcast %4 : vector<32x1xf32> to vector<32x256xf32>
    %6 = arith.mulf %3, %5 : vector<32x256xf32>
    %c0_6 = arith.constant 0 : index
    %c0_7 = arith.constant 0 : index
    %7 = vector.load %arg4[%c0_6, %c0_7] : memref<32x1xf32, #tpu.memory_space<vmem>>, vector<32x1xf32>
    %8 = vector.broadcast %7 : vector<32x1xf32> to vector<32x256xf32>
    %9 = arith.addf %6, %8 : vector<32x256xf32>
    %cst_8 = arith.constant 0.000000e+00 : f32
    %10 = vector.broadcast %cst_8 : f32 to vector<32x256xf32>
    %11 = arith.maximumf %9, %10 : vector<32x256xf32>
    %c0_9 = arith.constant 0 : index
    %c0_10 = arith.constant 0 : index
    %12 = vector.load %arg5[%c0_9, %c0_10] : memref<32x9xf32, #tpu.memory_space<vmem>>, vector<32x9xf32>
    %c0_11 = arith.constant 0 : index
    %c0_12 = arith.constant 0 : index
    %13 = vector.load %arg6[%c0_11, %c0_12] : memref<9x256xf32, #tpu.memory_space<vmem>>, vector<9x256xf32>
    %cst_13 = arith.constant 0.000000e+00 : f32
    %14 = vector.broadcast %cst_13 : f32 to vector<32x256xf32>
    %c17_i32 = arith.constant 17 : i32
    %15 = tpu.dynamic_rotate %11 by %c17_i32 dim 1 : vector<32x256xf32>, i32 -> vector<32x256xf32>
    %16 = vector.extract_strided_slice %13 {offsets = [0, 0], sizes = [1, 256], strides = [1, 1]} : vector<9x256xf32> to vector<1x256xf32>
    %17 = vector.broadcast %16 : vector<1x256xf32> to vector<32x256xf32>
    %18 = arith.mulf %15, %17 : vector<32x256xf32>
    %19 = vector.extract_strided_slice %12 {offsets = [0, 0], sizes = [32, 1], strides = [1, 1]} : vector<32x9xf32> to vector<32x1xf32>
    %20 = vector.broadcast %19 : vector<32x1xf32> to vector<32x256xf32>
    %21 = arith.mulf %18, %20 : vector<32x256xf32>
    %22 = arith.addf %14, %21 : vector<32x256xf32>
    %c16_i32 = arith.constant 16 : i32
    %23 = tpu.dynamic_rotate %11 by %c16_i32 dim 1 : vector<32x256xf32>, i32 -> vector<32x256xf32>
    %24 = vector.extract_strided_slice %13 {offsets = [1, 0], sizes = [1, 256], strides = [1, 1]} : vector<9x256xf32> to vector<1x256xf32>
    %25 = vector.broadcast %24 : vector<1x256xf32> to vector<32x256xf32>
    %26 = arith.mulf %23, %25 : vector<32x256xf32>
    %27 = vector.extract_strided_slice %12 {offsets = [0, 1], sizes = [32, 1], strides = [1, 1]} : vector<32x9xf32> to vector<32x1xf32>
    %28 = vector.broadcast %27 : vector<32x1xf32> to vector<32x256xf32>
    %29 = arith.mulf %26, %28 : vector<32x256xf32>
    %30 = arith.addf %22, %29 : vector<32x256xf32>
    %c15_i32 = arith.constant 15 : i32
    %31 = tpu.dynamic_rotate %11 by %c15_i32 dim 1 : vector<32x256xf32>, i32 -> vector<32x256xf32>
    %32 = vector.extract_strided_slice %13 {offsets = [2, 0], sizes = [1, 256], strides = [1, 1]} : vector<9x256xf32> to vector<1x256xf32>
    %33 = vector.broadcast %32 : vector<1x256xf32> to vector<32x256xf32>
    %34 = arith.mulf %31, %33 : vector<32x256xf32>
    %35 = vector.extract_strided_slice %12 {offsets = [0, 2], sizes = [32, 1], strides = [1, 1]} : vector<32x9xf32> to vector<32x1xf32>
    %36 = vector.broadcast %35 : vector<32x1xf32> to vector<32x256xf32>
    %37 = arith.mulf %34, %36 : vector<32x256xf32>
    %38 = arith.addf %30, %37 : vector<32x256xf32>
    %c1_i32 = arith.constant 1 : i32
    %39 = tpu.dynamic_rotate %11 by %c1_i32 dim 1 : vector<32x256xf32>, i32 -> vector<32x256xf32>
    %40 = vector.extract_strided_slice %13 {offsets = [3, 0], sizes = [1, 256], strides = [1, 1]} : vector<9x256xf32> to vector<1x256xf32>
    %41 = vector.broadcast %40 : vector<1x256xf32> to vector<32x256xf32>
    %42 = arith.mulf %39, %41 : vector<32x256xf32>
    %43 = vector.extract_strided_slice %12 {offsets = [0, 3], sizes = [32, 1], strides = [1, 1]} : vector<32x9xf32> to vector<32x1xf32>
    %44 = vector.broadcast %43 : vector<32x1xf32> to vector<32x256xf32>
    %45 = arith.mulf %42, %44 : vector<32x256xf32>
    %46 = arith.addf %38, %45 : vector<32x256xf32>
    %47 = vector.extract_strided_slice %12 {offsets = [0, 4], sizes = [32, 1], strides = [1, 1]} : vector<32x9xf32> to vector<32x1xf32>
    %48 = vector.broadcast %47 : vector<32x1xf32> to vector<32x256xf32>
    %49 = arith.mulf %11, %48 : vector<32x256xf32>
    %50 = arith.addf %46, %49 : vector<32x256xf32>
    %c255_i32 = arith.constant 255 : i32
    %51 = tpu.dynamic_rotate %11 by %c255_i32 dim 1 : vector<32x256xf32>, i32 -> vector<32x256xf32>
    %52 = vector.extract_strided_slice %13 {offsets = [5, 0], sizes = [1, 256], strides = [1, 1]} : vector<9x256xf32> to vector<1x256xf32>
    %53 = vector.broadcast %52 : vector<1x256xf32> to vector<32x256xf32>
    %54 = arith.mulf %51, %53 : vector<32x256xf32>
    %55 = vector.extract_strided_slice %12 {offsets = [0, 5], sizes = [32, 1], strides = [1, 1]} : vector<32x9xf32> to vector<32x1xf32>
    %56 = vector.broadcast %55 : vector<32x1xf32> to vector<32x256xf32>
    %57 = arith.mulf %54, %56 : vector<32x256xf32>
    %58 = arith.addf %50, %57 : vector<32x256xf32>
    %c241_i32 = arith.constant 241 : i32
    %59 = tpu.dynamic_rotate %11 by %c241_i32 dim 1 : vector<32x256xf32>, i32 -> vector<32x256xf32>
    %60 = vector.extract_strided_slice %13 {offsets = [6, 0], sizes = [1, 256], strides = [1, 1]} : vector<9x256xf32> to vector<1x256xf32>
    %61 = vector.broadcast %60 : vector<1x256xf32> to vector<32x256xf32>
    %62 = arith.mulf %59, %61 : vector<32x256xf32>
    %63 = vector.extract_strided_slice %12 {offsets = [0, 6], sizes = [32, 1], strides = [1, 1]} : vector<32x9xf32> to vector<32x1xf32>
    %64 = vector.broadcast %63 : vector<32x1xf32> to vector<32x256xf32>
    %65 = arith.mulf %62, %64 : vector<32x256xf32>
    %66 = arith.addf %58, %65 : vector<32x256xf32>
    %c240_i32 = arith.constant 240 : i32
    %67 = tpu.dynamic_rotate %11 by %c240_i32 dim 1 : vector<32x256xf32>, i32 -> vector<32x256xf32>
    %68 = vector.extract_strided_slice %13 {offsets = [7, 0], sizes = [1, 256], strides = [1, 1]} : vector<9x256xf32> to vector<1x256xf32>
    %69 = vector.broadcast %68 : vector<1x256xf32> to vector<32x256xf32>
    %70 = arith.mulf %67, %69 : vector<32x256xf32>
    %71 = vector.extract_strided_slice %12 {offsets = [0, 7], sizes = [32, 1], strides = [1, 1]} : vector<32x9xf32> to vector<32x1xf32>
    %72 = vector.broadcast %71 : vector<32x1xf32> to vector<32x256xf32>
    %73 = arith.mulf %70, %72 : vector<32x256xf32>
    %74 = arith.addf %66, %73 : vector<32x256xf32>
    %c239_i32 = arith.constant 239 : i32
    %75 = tpu.dynamic_rotate %11 by %c239_i32 dim 1 : vector<32x256xf32>, i32 -> vector<32x256xf32>
    %76 = vector.extract_strided_slice %13 {offsets = [8, 0], sizes = [1, 256], strides = [1, 1]} : vector<9x256xf32> to vector<1x256xf32>
    %77 = vector.broadcast %76 : vector<1x256xf32> to vector<32x256xf32>
    %78 = arith.mulf %75, %77 : vector<32x256xf32>
    %79 = vector.extract_strided_slice %12 {offsets = [0, 8], sizes = [32, 1], strides = [1, 1]} : vector<32x9xf32> to vector<32x1xf32>
    %80 = vector.broadcast %79 : vector<32x1xf32> to vector<32x256xf32>
    %81 = arith.mulf %78, %80 : vector<32x256xf32>
    %82 = arith.addf %74, %81 : vector<32x256xf32>
    %c0_14 = arith.constant 0 : index
    %c0_15 = arith.constant 0 : index
    %83 = vector.load %arg7[%c0_14, %c0_15] : memref<32x1xf32, #tpu.memory_space<vmem>>, vector<32x1xf32>
    %84 = vector.broadcast %83 : vector<32x1xf32> to vector<32x256xf32>
    %85 = arith.mulf %82, %84 : vector<32x256xf32>
    %c0_16 = arith.constant 0 : index
    %c0_17 = arith.constant 0 : index
    %86 = vector.load %arg8[%c0_16, %c0_17] : memref<32x1xf32, #tpu.memory_space<vmem>>, vector<32x1xf32>
    %87 = vector.broadcast %86 : vector<32x1xf32> to vector<32x256xf32>
    %88 = arith.addf %85, %87 : vector<32x256xf32>
    %cst_18 = arith.constant 0.000000e+00 : f32
    %89 = vector.broadcast %cst_18 : f32 to vector<32x256xf32>
    %90 = arith.maximumf %88, %89 : vector<32x256xf32>
    %c0_19 = arith.constant 0 : index
    %c0_20 = arith.constant 0 : index
    %91 = vector.load %arg9[%c0_19, %c0_20] : memref<8x32xf32, #tpu.memory_space<vmem>>, vector<8x32xf32>
    %cst_21 = arith.constant dense<0.000000e+00> : vector<8x256xf32>
    %92 = tpu.matmul %91, %90, %cst_21 {dimension_numbers = #tpu.dot_dimension_numbers<[1], [0], [0], [1], [0, 0, 1, 1], [], []>} : vector<8x32xf32>, vector<32x256xf32>, vector<8x256xf32> -> vector<8x256xf32>
    %c0_22 = arith.constant 0 : index
    %c0_23 = arith.constant 0 : index
    %93 = vector.load %arg10[%c0_22, %c0_23] : memref<8x1xf32, #tpu.memory_space<vmem>>, vector<8x1xf32>
    %94 = vector.broadcast %93 : vector<8x1xf32> to vector<8x256xf32>
    %95 = arith.mulf %92, %94 : vector<8x256xf32>
    %c0_24 = arith.constant 0 : index
    %c0_25 = arith.constant 0 : index
    %96 = vector.load %arg11[%c0_24, %c0_25] : memref<8x1xf32, #tpu.memory_space<vmem>>, vector<8x1xf32>
    %97 = vector.broadcast %96 : vector<8x1xf32> to vector<8x256xf32>
    %98 = arith.addf %95, %97 : vector<8x256xf32>
    %99 = arith.addf %98, %1 : vector<8x256xf32>
    %c0_26 = arith.constant 0 : index
    %c0_27 = arith.constant 0 : index
    %c0_28 = arith.constant 0 : index
    %100 = vector.load %arg12[%c0_26, %c0_27, %c0_28] : memref<1x8x256xf32, #tpu.memory_space<vmem>>, vector<1x8x256xf32>
    %101 = vector.shape_cast %100 : vector<1x8x256xf32> to vector<8x256xf32>
    %102 = vector.shape_cast %99 : vector<8x256xf32> to vector<1x8x256xf32>
    tpu.vector_store %arg12[%c0_26, %c0_27, %c0_28], %102 {strides = array<i32>} : memref<1x8x256xf32, #tpu.memory_space<vmem>>, vector<1x8x256xf32>,
    return
  }
  func.func @transform_0(%arg0: i32) -> (i32, i32, i32) {
    %c0_i32 = arith.constant 0 : i32
    %c0_i32_0 = arith.constant 0 : i32
    %c0_i32_1 = arith.constant 0 : i32
    return %arg0, %c0_i32, %c0_i32_0 : i32, i32, i32
  }
  func.func @transform_1(%arg0: i32) -> (i32, i32) {
    %c0_i32 = arith.constant 0 : i32
    %c0_i32_0 = arith.constant 0 : i32
    %c0_i32_1 = arith.constant 0 : i32
    return %c0_i32, %c0_i32_0 : i32, i32
  }
  func.func @transform_2(%arg0: i32) -> (i32, i32) {
    %c0_i32 = arith.constant 0 : i32
    %c0_i32_0 = arith.constant 0 : i32
    %c0_i32_1 = arith.constant 0 : i32
    return %c0_i32, %c0_i32_0 : i32, i32
  }
  func.func @transform_3(%arg0: i32) -> (i32, i32) {
    %c0_i32 = arith.constant 0 : i32
    %c0_i32_0 = arith.constant 0 : i32
    %c0_i32_1 = arith.constant 0 : i32
    return %c0_i32, %c0_i32_0 : i32, i32
  }
  func.func @transform_4(%arg0: i32) -> (i32, i32) {
    %c0_i32 = arith.constant 0 : i32
    %c0_i32_0 = arith.constant 0 : i32
    %c0_i32_1 = arith.constant 0 : i32
    return %c0_i32, %c0_i32_0 : i32, i32
  }
  func.func @transform_5(%arg0: i32) -> (i32, i32) {
    %c0_i32 = arith.constant 0 : i32
    %c0_i32_0 = arith.constant 0 : i32
    %c0_i32_1 = arith.constant 0 : i32
    return %c0_i32, %c0_i32_0 : i32, i32
  }
  func.func @transform_6(%arg0: i32) -> (i32, i32) {
    %c0_i32 = arith.constant 0 : i32
    %c0_i32_0 = arith.constant 0 : i32
    %c0_i32_1 = arith.constant 0 : i32
    return %c0_i32, %c0_i32_0 : i32, i32
  }
  func.func @transform_7(%arg0: i32) -> (i32, i32) {
    %c0_i32 = arith.constant 0 : i32
    %c0_i32_0 = arith.constant 0 : i32
    %c0_i32_1 = arith.constant 0 : i32
    return %c0_i32, %c0_i32_0 : i32, i32
  }
  func.func @transform_8(%arg0: i32) -> (i32, i32) {
    %c0_i32 = arith.constant 0 : i32
    %c0_i32_0 = arith.constant 0 : i32
    %c0_i32_1 = arith.constant 0 : i32
    return %c0_i32, %c0_i32_0 : i32, i32
  }
  func.func @transform_9(%arg0: i32) -> (i32, i32) {
    %c0_i32 = arith.constant 0 : i32
    %c0_i32_0 = arith.constant 0 : i32
    %c0_i32_1 = arith.constant 0 : i32
    return %c0_i32, %c0_i32_0 : i32, i32
  }
  func.func @transform_10(%arg0: i32) -> (i32, i32) {
    %c0_i32 = arith.constant 0 : i32
    %c0_i32_0 = arith.constant 0 : i32
    %c0_i32_1 = arith.constant 0 : i32
    return %c0_i32, %c0_i32_0 : i32, i32
  }
  func.func @transform_11(%arg0: i32) -> (i32, i32, i32) {
    %c0_i32 = arith.constant 0 : i32
    %c0_i32_0 = arith.constant 0 : i32
    %c0_i32_1 = arith.constant 0 : i32
    return %arg0, %c0_i32, %c0_i32_0 : i32, i32, i32
  }
}

</mosaic_0001>

<llo_original>
// kernel: tpu_custom_call.1
$region0: #{tpu_custom_call.1}
  #allocation0 [shape = 'u32[]', space=smem, size = 0x4, offset = 0x4, fixed_abs, tag = 'smem constant byte address 0x4 - core index']
  #allocation1 [shape = 'u32[144,128]{1,0:T(1,128)}', space=vmem, size = 0x12000, scoped, tag = 'internal scratch']
  %s0 = inlined_call_operand.vmem [shape: f32[2,8,256], index: 0, kind: input, shape index: {}]
  %s1 = inlined_call_operand.vmem [shape: f32[32,8], index: 1, kind: input, shape index: {}]
  %s2 = inlined_call_operand.vmem [shape: f32[32,1], index: 2, kind: input, shape index: {}]
  %s3 = inlined_call_operand.vmem [shape: f32[32,1], index: 3, kind: input, shape index: {}]
  %s4 = inlined_call_operand.vmem [shape: f32[32,9], index: 4, kind: input, shape index: {}]
  %s5 = inlined_call_operand.vmem [shape: f32[9,256], index: 5, kind: input, shape index: {}]
  %s6 = inlined_call_operand.vmem [shape: f32[32,1], index: 6, kind: input, shape index: {}]
  %s7 = inlined_call_operand.vmem [shape: f32[32,1], index: 7, kind: input, shape index: {}]
  %s8 = inlined_call_operand.vmem [shape: f32[8,32], index: 8, kind: input, shape index: {}]
  %s9 = inlined_call_operand.vmem [shape: f32[8,1], index: 9, kind: input, shape index: {}]
  %s10 = inlined_call_operand.vmem [shape: f32[8,1], index: 10, kind: input, shape index: {}]
  %s11 = inlined_call_operand.hbm [shape: f32[2,8,256], index: 11, kind: output, shape index: {}]
  %s12 = sld [smem:[#allocation0]]
  $region77: #{tpu_custom_call.1} parent=0
    _
  %s14 = ssub.s32 1, %s12
  %s15 = scalar_select 0, %s14, %s12
  $region1: #{tpu_custom_call.1} parent=0
    #allocation2 [shape = 'u8[16384]{0}', space=vmem, size = 0x4000, scoped, tag = 'output window, operand 0']
    #allocation3 [shape = 's32[2]{0}', space=sflag, size = 0x8, scoped, tag = 'scoped memory for tpu_custom_call.1']
    %16 = vsyncpa [#allocation3], 0
    %s17 = scalar_lea.sflag [#allocation3], 1
    %18 = vsyncpa %s17, 0
    loop: start=0, step=1, limit=4
    $region2: #{tpu_custom_call.1} parent=1 // loop_pre_header
      _
    $region3: #{tpu_custom_call.1} parent=1 // loop_header
      %s20 = sphi 0, %s24
      %p21 = scmp.ge.s32.totalorder %s20, 4
      %s30 = sphi 0, %s32
      %s33 = sphi 0, %s30
      %s34 = sphi 0, %s33
      %s50 = sphi 0, %s34
      %s54 = sphi 0, %s54
      %s56 = sphi 0, %s54
      %s57 = sphi 0, %s56
      %s71 = sphi 0, %s57
      %s75 = sphi 0, %s75
      %s77 = sphi 0, %s75
      %s78 = sphi 0, %s77
      %s92 = sphi 0, %s78
      %s96 = sphi 0, %s96
      %s98 = sphi 0, %s96
      %s99 = sphi 0, %s98
      %s113 = sphi 0, %s99
      %s117 = sphi 0, %s117
      %s119 = sphi 0, %s117
      %s120 = sphi 0, %s119
      %s134 = sphi 0, %s120
      %s138 = sphi 0, %s138
      %s140 = sphi 0, %s138
      %s141 = sphi 0, %s140
      %s155 = sphi 0, %s141
      %s159 = sphi 0, %s159
      %s161 = sphi 0, %s159
      %s162 = sphi 0, %s161
      %s176 = sphi 0, %s162
      %s180 = sphi 0, %s180
      %s182 = sphi 0, %s180
      %s183 = sphi 0, %s182
      %s197 = sphi 0, %s183
      %s201 = sphi 0, %s201
      %s203 = sphi 0, %s201
      %s204 = sphi 0, %s203
      %s218 = sphi 0, %s204
      %s222 = sphi 0, %s222
      %s224 = sphi 0, %s222
      %s225 = sphi 0, %s224
      %s239 = sphi 0, %s225
      %s243 = sphi 0, %s243
      %s245 = sphi 0, %s243
      %s246 = sphi 0, %s245
      %s260 = sphi 0, %s246
      %s266 = sphi 0, %s268
      %s269 = sphi 0, %s266
      %s270 = sphi 0, %s269
      %s286 = sphi 0, %s270
    $region4: #{tpu_custom_call.1} parent=1 // loop_header_branch
      %23 = sbr.rel (%p21) target = $region8
    $region5: #{tpu_custom_call.1} parent=1 // loop_body
      %s25 = ssub.s32 %s20, 1
      %s26 = ssub.s32 %s20, 2
      %s27 = sadd.s32 %s20, 1
      %s28 = ssub.s32 %s20, %s27
      %p29 = scmp.eq.s32.totalorder %s28, 0
      %s31 = sadd.s32 %s30, 1
      %s32 = scalar_select %p29, %s30, %s31
      %p35 = pneg %p29
      %p36 = scmp.eq.s32.totalorder %s20, 1
      %p37 = por %p35, %p36
      %p38 = scmp.ne.s32.totalorder %s30, %s33
      %p39 = scmp.eq.s32.totalorder %s20, 0
      %p40 = por %p38, %p39
      %p41 = scmp.ne.s32.totalorder %s30, %s33
      %p42 = scmp.eq.s32.totalorder %s25, 1
      %p43 = por %p41, %p42
      %p44 = scmp.ne.s32.totalorder %s33, %s34
      %p45 = scmp.eq.s32.totalorder %s25, 0
      %p46 = por %p44, %p45
      %p47 = scmp.ne.s32.totalorder %s33, %s34
      %p48 = scmp.eq.s32.totalorder %s26, 1
      %p49 = por %p47, %p48
      %p51 = scmp.ne.s32.totalorder %s34, %s50
      %p52 = scmp.eq.s32.totalorder %s26, 0
      %p53 = por %p51, %p52
      %s55 = sadd.s32 %s54, 1
      %p58 = scmp.eq.s32.totalorder %s20, 1
      %p59 = scmp.ne.s32.totalorder %s54, %s56
      %p60 = scmp.eq.s32.totalorder %s20, 0
      %p61 = por %p59, %p60
      %p62 = scmp.ne.s32.totalorder %s54, %s56
      %p63 = scmp.eq.s32.totalorder %s25, 1
      %p64 = por %p62, %p63
      %p65 = scmp.ne.s32.totalorder %s56, %s57
      %p66 = scmp.eq.s32.totalorder %s25, 0
      %p67 = por %p65, %p66
      %p68 = scmp.ne.s32.totalorder %s56, %s57
      %p69 = scmp.eq.s32.totalorder %s26, 1
      %p70 = por %p68, %p69
      %p72 = scmp.ne.s32.totalorder %s57, %s71
      %p73 = scmp.eq.s32.totalorder %s26, 0
      %p74 = por %p72, %p73
      %s76 = sadd.s32 %s75, 1
      %p79 = scmp.eq.s32.totalorder %s20, 1
      %p80 = scmp.ne.s32.totalorder %s75, %s77
      %p81 = scmp.eq.s32.totalorder %s20, 0
      %p82 = por %p80, %p81
      %p83 = scmp.ne.s32.totalorder %s75, %s77
      %p84 = scmp.eq.s32.totalorder %s25, 1
      %p85 = por %p83, %p84
      %p86 = scmp.ne.s32.totalorder %s77, %s78
      %p87 = scmp.eq.s32.totalorder %s25, 0
      %p88 = por %p86, %p87
      %p89 = scmp.ne.s32.totalorder %s77, %s78
      %p90 = scmp.eq.s32.totalorder %s26, 1
      %p91 = por %p89, %p90
      %p93 = scmp.ne.s32.totalorder %s78, %s92
      %p94 = scmp.eq.s32.totalorder %s26, 0
      %p95 = por %p93, %p94
      %s97 = sadd.s32 %s96, 1
      %p100 = scmp.eq.s32.totalorder %s20, 1
      %p101 = scmp.ne.s32.totalorder %s96, %s98
      %p102 = scmp.eq.s32.totalorder %s20, 0
      %p103 = por %p101, %p102
      %p104 = scmp.ne.s32.totalorder %s96, %s98
      %p105 = scmp.eq.s32.totalorder %s25, 1
      %p106 = por %p104, %p105
      %p107 = scmp.ne.s32.totalorder %s98, %s99
      %p108 = scmp.eq.s32.totalorder %s25, 0
      %p109 = por %p107, %p108
      %p110 = scmp.ne.s32.totalorder %s98, %s99
      %p111 = scmp.eq.s32.totalorder %s26, 1
      %p112 = por %p110, %p111
      %p114 = scmp.ne.s32.totalorder %s99, %s113
      %p115 = scmp.eq.s32.totalorder %s26, 0
      %p116 = por %p114, %p115
      %s118 = sadd.s32 %s117, 1
      %p121 = scmp.eq.s32.totalorder %s20, 1
      %p122 = scmp.ne.s32.totalorder %s117, %s119
      %p123 = scmp.eq.s32.totalorder %s20, 0
      %p124 = por %p122, %p123
      %p125 = scmp.ne.s32.totalorder %s117, %s119
      %p126 = scmp.eq.s32.totalorder %s25, 1
      %p127 = por %p125, %p126
      %p128 = scmp.ne.s32.totalorder %s119, %s120
      %p129 = scmp.eq.s32.totalorder %s25, 0
      %p130 = por %p128, %p129
      %p131 = scmp.ne.s32.totalorder %s119, %s120
      %p132 = scmp.eq.s32.totalorder %s26, 1
      %p133 = por %p131, %p132
      %p135 = scmp.ne.s32.totalorder %s120, %s134
      %p136 = scmp.eq.s32.totalorder %s26, 0
      %p137 = por %p135, %p136
      %s139 = sadd.s32 %s138, 1
      %p142 = scmp.eq.s32.totalorder %s20, 1
      %p143 = scmp.ne.s32.totalorder %s138, %s140
      %p144 = scmp.eq.s32.totalorder %s20, 0
      %p145 = por %p143, %p144
      %p146 = scmp.ne.s32.totalorder %s138, %s140
      %p147 = scmp.eq.s32.totalorder %s25, 1
      %p148 = por %p146, %p147
      %p149 = scmp.ne.s32.totalorder %s140, %s141
      %p150 = scmp.eq.s32.totalorder %s25, 0
      %p151 = por %p149, %p150
      %p152 = scmp.ne.s32.totalorder %s140, %s141
      %p153 = scmp.eq.s32.totalorder %s26, 1
      %p154 = por %p152, %p153
      %p156 = scmp.ne.s32.totalorder %s141, %s155
      %p157 = scmp.eq.s32.totalorder %s26, 0
      %p158 = por %p156, %p157
      %s160 = sadd.s32 %s159, 1
      %p163 = scmp.eq.s32.totalorder %s20, 1
      %p164 = scmp.ne.s32.totalorder %s159, %s161
      %p165 = scmp.eq.s32.totalorder %s20, 0
      %p166 = por %p164, %p165
      %p167 = scmp.ne.s32.totalorder %s159, %s161
      %p168 = scmp.eq.s32.totalorder %s25, 1
      %p169 = por %p167, %p168
      %p170 = scmp.ne.s32.totalorder %s161, %s162
      %p171 = scmp.eq.s32.totalorder %s25, 0
      %p172 = por %p170, %p171
      %p173 = scmp.ne.s32.totalorder %s161, %s162
      %p174 = scmp.eq.s32.totalorder %s26, 1
      %p175 = por %p173, %p174
      %p177 = scmp.ne.s32.totalorder %s162, %s176
      %p178 = scmp.eq.s32.totalorder %s26, 0
      %p179 = por %p177, %p178
      %s181 = sadd.s32 %s180, 1
      %p184 = scmp.eq.s32.totalorder %s20, 1
      %p185 = scmp.ne.s32.totalorder %s180, %s182
      %p186 = scmp.eq.s32.totalorder %s20, 0
      %p187 = por %p185, %p186
      %p188 = scmp.ne.s32.totalorder %s180, %s182
      %p189 = scmp.eq.s32.totalorder %s25, 1
      %p190 = por %p188, %p189
      %p191 = scmp.ne.s32.totalorder %s182, %s183
      %p192 = scmp.eq.s32.totalorder %s25, 0
      %p193 = por %p191, %p192
      %p194 = scmp.ne.s32.totalorder %s182, %s183
      %p195 = scmp.eq.s32.totalorder %s26, 1
      %p196 = por %p194, %p195
      %p198 = scmp.ne.s32.totalorder %s183, %s197
      %p199 = scmp.eq.s32.totalorder %s26, 0
      %p200 = por %p198, %p199
      %s202 = sadd.s32 %s201, 1
      %p205 = scmp.eq.s32.totalorder %s20, 1
      %p206 = scmp.ne.s32.totalorder %s201, %s203
      %p207 = scmp.eq.s32.totalorder %s20, 0
      %p208 = por %p206, %p207
      %p209 = scmp.ne.s32.totalorder %s201, %s203
      %p210 = scmp.eq.s32.totalorder %s25, 1
      %p211 = por %p209, %p210
      %p212 = scmp.ne.s32.totalorder %s203, %s204
      %p213 = scmp.eq.s32.totalorder %s25, 0
      %p214 = por %p212, %p213
      %p215 = scmp.ne.s32.totalorder %s203, %s204
      %p216 = scmp.eq.s32.totalorder %s26, 1
      %p217 = por %p215, %p216
      %p219 = scmp.ne.s32.totalorder %s204, %s218
      %p220 = scmp.eq.s32.totalorder %s26, 0
      %p221 = por %p219, %p220
      %s223 = sadd.s32 %s222, 1
      %p226 = scmp.eq.s32.totalorder %s20, 1
      %p227 = scmp.ne.s32.totalorder %s222, %s224
      %p228 = scmp.eq.s32.totalorder %s20, 0
      %p229 = por %p227, %p228
      %p230 = scmp.ne.s32.totalorder %s222, %s224
      %p231 = scmp.eq.s32.totalorder %s25, 1
      %p232 = por %p230, %p231
      %p233 = scmp.ne.s32.totalorder %s224, %s225
      %p234 = scmp.eq.s32.totalorder %s25, 0
      %p235 = por %p233, %p234
      %p236 = scmp.ne.s32.totalorder %s224, %s225
      %p237 = scmp.eq.s32.totalorder %s26, 1
      %p238 = por %p236, %p237
      %p240 = scmp.ne.s32.totalorder %s225, %s239
      %p241 = scmp.eq.s32.totalorder %s26, 0
      %p242 = por %p240, %p241
      %s244 = sadd.s32 %s243, 1
      %p247 = scmp.eq.s32.totalorder %s20, 1
      %p248 = scmp.ne.s32.totalorder %s243, %s245
      %p249 = scmp.eq.s32.totalorder %s20, 0
      %p250 = por %p248, %p249
      %p251 = scmp.ne.s32.totalorder %s243, %s245
      %p252 = scmp.eq.s32.totalorder %s25, 1
      %p253 = por %p251, %p252
      %p254 = scmp.ne.s32.totalorder %s245, %s246
      %p255 = scmp.eq.s32.totalorder %s25, 0
      %p256 = por %p254, %p255
      %p257 = scmp.ne.s32.totalorder %s245, %s246
      %p258 = scmp.eq.s32.totalorder %s26, 1
      %p259 = por %p257, %p258
      %p261 = scmp.ne.s32.totalorder %s246, %s260
      %p262 = scmp.eq.s32.totalorder %s26, 0
      %p263 = por %p261, %p262
      %s264 = ssub.s32 %s20, %s27
      %p265 = scmp.eq.s32.totalorder %s264, 0
      %s267 = sadd.s32 %s266, 1
      %s268 = scalar_select %p265, %s266, %s267
      %p271 = pneg %p265
      %p272 = scmp.eq.s32.totalorder %s20, 1
      %p273 = por %p271, %p272
      %p274 = scmp.ne.s32.totalorder %s266, %s269
      %p275 = scmp.eq.s32.totalorder %s20, 0
      %p276 = por %p274, %p275
      %p277 = scmp.ne.s32.totalorder %s266, %s269
      %p278 = scmp.eq.s32.totalorder %s25, 1
      %p279 = por %p277, %p278
      %p280 = scmp.ne.s32.totalorder %s269, %s270
      %p281 = scmp.eq.s32.totalorder %s25, 0
      %p282 = por %p280, %p281
      %p283 = scmp.ne.s32.totalorder %s269, %s270
      %p284 = scmp.eq.s32.totalorder %s26, 1
      %p285 = por %p283, %p284
      %p287 = scmp.ne.s32.totalorder %s270, %s286
      %p288 = scmp.eq.s32.totalorder %s26, 0
      %p289 = por %p287, %p288
      %p290 = scmp.le.s32.totalorder 1, %s20
      %p291 = scmp.lt.s32.totalorder %s20, 3
      %p292 = pnand %p290, %p291
      %p293 = pneg %p292
      // Predicated region
      $region9: #{tpu_custom_call.1} parent=5 // pred_check
        _
      $region10: #{tpu_custom_call.1} parent=5 // pred_check_branch
        %295 = sbr.rel (%p292) target = $region12
      $region11: #{tpu_custom_call.1} parent=5 // pred_region
        %s296 = ssub.s32 %s20, 1
        // Predicated region
        $region13: #{tpu_custom_call.1} parent=11 // pred_check
          %p297 = pneg %p67
        $region14: #{tpu_custom_call.1} parent=11 // pred_check_branch
          %299 = sbr.rel (%p297) target = $region16
        $region15: #{tpu_custom_call.1} parent=11 // pred_region
          _
        $region16: #{tpu_custom_call.1} parent=11 // pred_fallthru
          _
        // Predicated region
        $region17: #{tpu_custom_call.1} parent=11 // pred_check
          %p300 = pneg %p88
        $region18: #{tpu_custom_call.1} parent=11 // pred_check_branch
          %302 = sbr.rel (%p300) target = $region20
        $region19: #{tpu_custom_call.1} parent=11 // pred_region
          _
        $region20: #{tpu_custom_call.1} parent=11 // pred_fallthru
          _
        // Predicated region
        $region21: #{tpu_custom_call.1} parent=11 // pred_check
          %p303 = pneg %p109
        $region22: #{tpu_custom_call.1} parent=11 // pred_check_branch
          %305 = sbr.rel (%p303) target = $region24
        $region23: #{tpu_custom_call.1} parent=11 // pred_region
          _
        $region24: #{tpu_custom_call.1} parent=11 // pred_fallthru
          _
        // Predicated region
        $region25: #{tpu_custom_call.1} parent=11 // pred_check
          %p306 = pneg %p130
        $region26: #{tpu_custom_call.1} parent=11 // pred_check_branch
          %308 = sbr.rel (%p306) target = $region28
        $region27: #{tpu_custom_call.1} parent=11 // pred_region
          _
        $region28: #{tpu_custom_call.1} parent=11 // pred_fallthru
          _
        // Predicated region
        $region29: #{tpu_custom_call.1} parent=11 // pred_check
          %p309 = pneg %p151
        $region30: #{tpu_custom_call.1} parent=11 // pred_check_branch
          %311 = sbr.rel (%p309) target = $region32
        $region31: #{tpu_custom_call.1} parent=11 // pred_region
          _
        $region32: #{tpu_custom_call.1} parent=11 // pred_fallthru
          _
        // Predicated region
        $region33: #{tpu_custom_call.1} parent=11 // pred_check
          %p312 = pneg %p172
        $region34: #{tpu_custom_call.1} parent=11 // pred_check_branch
          %314 = sbr.rel (%p312) target = $region36
        $region35: #{tpu_custom_call.1} parent=11 // pred_region
          _
        $region36: #{tpu_custom_call.1} parent=11 // pred_fallthru
          _
        // Predicated region
        $region37: #{tpu_custom_call.1} parent=11 // pred_check
          %p315 = pneg %p193
        $region38: #{tpu_custom_call.1} parent=11 // pred_check_branch
          %317 = sbr.rel (%p315) target = $region40
        $region39: #{tpu_custom_call.1} parent=11 // pred_region
          _
        $region40: #{tpu_custom_call.1} parent=11 // pred_fallthru
          _
        // Predicated region
        $region41: #{tpu_custom_call.1} parent=11 // pred_check
          %p318 = pneg %p214
        $region42: #{tpu_custom_call.1} parent=11 // pred_check_branch
          %320 = sbr.rel (%p318) target = $region44
        $region43: #{tpu_custom_call.1} parent=11 // pred_region
          _
        $region44: #{tpu_custom_call.1} parent=11 // pred_fallthru
          _
        // Predicated region
        $region45: #{tpu_custom_call.1} parent=11 // pred_check
          %p321 = pneg %p235
        $region46: #{tpu_custom_call.1} parent=11 // pred_check_branch
          %323 = sbr.rel (%p321) target = $region48
        $region47: #{tpu_custom_call.1} parent=11 // pred_region
          _
        $region48: #{tpu_custom_call.1} parent=11 // pred_fallthru
          _
        // Predicated region
        $region49: #{tpu_custom_call.1} parent=11 // pred_check
          %p324 = pneg %p256
        $region50: #{tpu_custom_call.1} parent=11 // pred_check_branch
          %326 = sbr.rel (%p324) target = $region52
        $region51: #{tpu_custom_call.1} parent=11 // pred_region
          _
        $region52: #{tpu_custom_call.1} parent=11 // pred_fallthru
          _
      $region12: #{tpu_custom_call.1} parent=5 // pred_fallthru
        _
      %p327 = scmp.lt.s32.totalorder %s20, 2
      // Predicated region
      $region53: #{tpu_custom_call.1} parent=5 // pred_check
        %p328 = pneg %p327
      $region54: #{tpu_custom_call.1} parent=5 // pred_check_branch
        %330 = sbr.rel (%p328) target = $region56
      $region55: #{tpu_custom_call.1} parent=5 // pred_region
        // Predicated region
        $region57: #{tpu_custom_call.1} parent=55 // pred_check
          %p331 = pneg %p40
        $region58: #{tpu_custom_call.1} parent=55 // pred_check_branch
          %333 = sbr.rel (%p331) target = $region60
        $region59: #{tpu_custom_call.1} parent=55 // pred_region
          %p334 = scmp.lt.s32.totalorder %s20, 1
          %s335 = scalar_select %p334, %s20, 1
          %s336 = smul.addr %s335, 2
          %s337 = smul.addr %s336, 8
          %s338 = scalar_lea.vmem %s0, %s337
        $region60: #{tpu_custom_call.1} parent=55 // pred_fallthru
          _
      $region56: #{tpu_custom_call.1} parent=5 // pred_fallthru
        _
      %p339 = scmp.le.s32.totalorder 1, %s20
      %p340 = scmp.lt.s32.totalorder %s20, 3
      %p341 = pnand %p339, %p340
      %p342 = pneg %p341
      // Predicated region
      $region61: #{tpu_custom_call.1} parent=5 // pred_check
        _
      $region62: #{tpu_custom_call.1} parent=5 // pred_check_branch
        %344 = sbr.rel (%p341) target = $region64
      $region63: #{tpu_custom_call.1} parent=5 // pred_region
        %s345 = ssub.s32 %s20, 1
        %p346 = scmp.lt.s32.totalorder %s25, 1
        %s347 = scalar_select %p346, %s25, 1
        %s348 = smul.addr %s347, 2
        %s349 = smul.addr %s348, 8
        %s350 = scalar_lea.vmem %s0, %s349
        %p351 = pneg %p46
        %p352 = pneg %p43
        %p353 = pneg %p67
        %p354 = pneg %p64
        %p355 = pneg %p88
        %p356 = pneg %p85
        %p357 = pneg %p109
        %p358 = pneg %p106
        %p359 = pneg %p130
        %p360 = pneg %p127
        %p361 = pneg %p151
        %p362 = pneg %p148
        %p363 = pneg %p172
        %p364 = pneg %p169
        %p365 = pneg %p193
        %p366 = pneg %p190
        %p367 = pneg %p214
        %p368 = pneg %p211
        %p369 = pneg %p235
        %p370 = pneg %p232
        %p371 = pneg %p256
        %p372 = pneg %p253
        %p373 = pneg %p282
        %p374 = pneg %p279
        %s375 = sand.u32 %s269, 1
        %s376 = scalar_lea.sflag [#allocation3], %s375
        %s377 = sand.u32 %s269, 1
        %s378 = smul.addr %s377, 16
        %s379 = scalar_lea.vmem [#allocation2], %s378
        %p380 = scmp.lt.s32.totalorder %s25, 1
        %s381 = scalar_select %p380, %s25, 1
        %s382 = smul.addr %s381, 2
        %s383 = smul.addr %s382, 8
        %s384 = scalar_lea.vmem %s0, %s383
        %v385 = vld [vmem:[%s384] sm:$0xff]
        %v386 = vld [vmem:[%s384 + $0x8] sm:$0xff]
        %v387 = vld [vmem:[%s1] sm:$0xff]
        %v388 = vld [vmem:[%s1 + $0x8] sm:$0xff]
        %v389 = vld [vmem:[%s1 + $0x10] sm:$0xff]
        %v390 = vld [vmem:[%s1 + $0x18] sm:$0xff]
        %vm391 = vcmask 64512
        %v393 = vsel %vm391, %v387, 0
        %v396 = vsel %vm391, %v388, 0
        %v399 = vsel %vm391, %v389, 0
        %v402 = vsel %vm391, %v390, 0
        %404 = vmatprep.subr.mxu0 %v386
        %405 = vmatpush1.msra.mxu0 %v385
        %406 = vmatprep.subr.mxu0 0.0
        %407 = vmatpush1.msra.mxu0 0.0
        %408 = vmatprep.subr.mxu0 0.0
        %409 = vmatpush1.msra.mxu0 0.0
        %410 = vmatprep.subr.mxu0 0.0
        %411 = vmatpush1.msra.mxu0 0.0
        %412 = vmatprep.subr.mxu0 0.0
        %413 = vmatpush1.msra.mxu0 0.0
        %414 = vmatprep.subr.mxu0 0.0
        %415 = vmatpush1.msra.mxu0 0.0
        %416 = vmatprep.subr.mxu0 0.0
        %417 = vmatpush1.msra.mxu0 0.0
        %418 = vmatprep.subr.mxu0 0.0
        %419 = vmatpush1.msra.mxu0 0.0
        %420 = vmatprep.subr.mxu0 0.0
        %421 = vmatpush1.msra.mxu0 0.0
        %422 = vmatprep.subr.mxu0 0.0
        %423 = vmatpush1.msra.mxu0 0.0
        %424 = vmatprep.subr.mxu0 0.0
        %425 = vmatpush1.msra.mxu0 0.0
        %426 = vmatprep.subr.mxu0 0.0
        %427 = vmatpush1.msra.mxu0 0.0
        %428 = vmatprep.subr.mxu0 0.0
        %429 = vmatpush1.msra.mxu0 0.0
        %430 = vmatprep.subr.mxu0 0.0
        %431 = vmatpush1.msra.mxu0 0.0
        %432 = vmatprep.subr.mxu0 0.0
        %433 = vmatpush1.msra.mxu0 0.0
        %434 = vmatprep.subr.mxu0 0.0
        %435 = vmatpush1.msra.mxu0 0.0
        %436 = vmatprep.subr.mxu0 0.0
        %437 = vmatpush1.msra.mxu0 0.0
        %438 = vmatprep.subr.mxu0 0.0
        %439 = vmatpush1.msra.mxu0 0.0
        %440 = vmatprep.subr.mxu0 0.0
        %441 = vmatpush1.msra.mxu0 0.0
        %442 = vmatprep.subr.mxu0 0.0
        %443 = vmatpush1.msra.mxu0 0.0
        %444 = vmatprep.subr.mxu0 0.0
        %445 = vmatpush1.msra.mxu0 0.0
        %446 = vmatprep.subr.mxu0 0.0
        %447 = vmatpush1.msra.mxu0 0.0
        %448 = vmatprep.subr.mxu0 0.0
        %449 = vmatpush1.msra.mxu0 0.0
        %450 = vmatprep.subr.mxu0 0.0
        %451 = vmatpush1.msra.mxu0 0.0
        %452 = vmatprep.subr.mxu0 0.0
        %453 = vmatpush1.msra.mxu0 0.0
        %454 = vmatprep.subr.mxu0 0.0
        %455 = vmatpush1.msra.mxu0 0.0
        %456 = vmatprep.subr.mxu0 0.0
        %457 = vmatpush1.msra.mxu0 0.0
        %458 = vmatprep.subr.mxu0 0.0
        %459 = vmatpush1.msra.mxu0 0.0
        %460 = vmatprep.subr.mxu0 0.0
        %461 = vmatpush1.msra.mxu0 0.0
        %462 = vmatprep.subr.mxu0 0.0
        %463 = vmatpush1.msra.mxu0 0.0
        %464 = vmatprep.subr.mxu0 0.0
        %465 = vmatpush1.msra.mxu0 0.0
        %466 = vmatprep.subr.mxu0 0.0
        %467 = vmatpush1.msra.mxu0 0.0
        %468 = vmatprep.mubr.f32.mxu0 0.0
        %469 = vmatmul.mubr.f32.gmra.mrb[0].mxu0 %v393
        %v470 = vpop.f32.mrb[0].mxu0
        %v471 = vadd.f32 0.0, %v470
        %v472 = vpop.f32.mrb[0].mxu0
        %v473 = vadd.f32 0.0, %v472
        %474 = vmatprep.mubr.f32.mxu0 0.0
        %475 = vmatmul.mubr.f32.gmra.mrb[0].mxu0 %v396
        %v476 = vpop.f32.mrb[0].mxu0
        %v477 = vadd.f32 0.0, %v476
        %v478 = vpop.f32.mrb[0].mxu0
        %v479 = vadd.f32 0.0, %v478
        %480 = vmatprep.mubr.f32.mxu0 0.0
        %481 = vmatmul.mubr.f32.gmra.mrb[0].mxu0 %v399
        %v482 = vpop.f32.mrb[0].mxu0
        %v483 = vadd.f32 0.0, %v482
        %v484 = vpop.f32.mrb[0].mxu0
        %v485 = vadd.f32 0.0, %v484
        %486 = vmatprep.mubr.f32.mxu0 0.0
        %487 = vmatmul.mubr.f32.gmra.mrb[0].mxu0 %v402
        %v488 = vpop.f32.mrb[0].mxu0
        %v489 = vadd.f32 0.0, %v488
        %v490 = vpop.f32.mrb[0].mxu0
        %v491 = vadd.f32 0.0, %v490
        %492 = vdwg.mxu0
        %v493 = vld [vmem:[%s2] sm:$0xff]
        %v494 = vld [vmem:[%s2 + $0x8] sm:$0xff]
        %v495 = vld [vmem:[%s2 + $0x10] sm:$0xff]
        %v496 = vld [vmem:[%s2 + $0x18] sm:$0xff]
        %498 = vset.pattern.permute.xlu0 0
        %499 = vperm.xlu0 %498, %v493
        %v500 = vpop.permute.xlu0 %499
        %503 = vset.pattern.permute.xlu0 0
        %504 = vperm.xlu0 %503, %v494
        %v505 = vpop.permute.xlu0 %504
        %508 = vset.pattern.permute.xlu0 0
        %509 = vperm.xlu0 %508, %v495
        %v510 = vpop.permute.xlu0 %509
        %513 = vset.pattern.permute.xlu0 0
        %514 = vperm.xlu0 %513, %v496
        %v515 = vpop.permute.xlu0 %514
        %v517 = vmul.f32 %v471, %v500
        %v518 = vmul.f32 %v473, %v500
        %v519 = vmul.f32 %v477, %v505
        %v520 = vmul.f32 %v479, %v505
        %v521 = vmul.f32 %v483, %v510
        %v522 = vmul.f32 %v485, %v510
        %v523 = vmul.f32 %v489, %v515
        %v524 = vmul.f32 %v491, %v515
        %v525 = vld [vmem:[%s3] sm:$0xff]
        %v526 = vld [vmem:[%s3 + $0x8] sm:$0xff]
        %v527 = vld [vmem:[%s3 + $0x10] sm:$0xff]
        %v528 = vld [vmem:[%s3 + $0x18] sm:$0xff]
        %530 = vset.pattern.permute.xlu0 0
        %531 = vperm.xlu0 %530, %v525
        %v532 = vpop.permute.xlu0 %531
        %535 = vset.pattern.permute.xlu0 0
        %536 = vperm.xlu0 %535, %v526
        %v537 = vpop.permute.xlu0 %536
        %540 = vset.pattern.permute.xlu0 0
        %541 = vperm.xlu0 %540, %v527
        %v542 = vpop.permute.xlu0 %541
        %545 = vset.pattern.permute.xlu0 0
        %546 = vperm.xlu0 %545, %v528
        %v547 = vpop.permute.xlu0 %546
        %v549 = vadd.f32 %v517, %v532
        %v550 = vadd.f32 %v518, %v532
        %v551 = vadd.f32 %v519, %v537
        %v552 = vadd.f32 %v520, %v537
        %v553 = vadd.f32 %v521, %v542
        %v554 = vadd.f32 %v522, %v542
        %v555 = vadd.f32 %v523, %v547
        %v556 = vadd.f32 %v524, %v547
        %v557 = vmax.f32 %v549, 0.0
        %v558 = vmax.f32 %v550, 0.0
        %v559 = vmax.f32 %v551, 0.0
        %v560 = vmax.f32 %v552, 0.0
        %v561 = vmax.f32 %v553, 0.0
        %v562 = vmax.f32 %v554, 0.0
        %v563 = vmax.f32 %v555, 0.0
        %v564 = vmax.f32 %v556, 0.0
        %v565 = vld [vmem:[%s4] sm:$0xff]
        %v566 = vld [vmem:[%s4 + $0x8] sm:$0xff]
        %v567 = vld [vmem:[%s4 + $0x10] sm:$0xff]
        %v568 = vld [vmem:[%s4 + $0x18] sm:$0xff]
        %v569 = vld [vmem:[%s5] sm:$0xff]
        %v570 = vld [vmem:[%s5 + $0x8] sm:$0xff]
        %v571 = vld [vmem:[%s5 + $0x10] sm:$0x1]
        %v572 = vld [vmem:[%s5 + $0x18] sm:$0x1]
        %573 = vrot.lane.b32.xlu0 %v557, 17
        %v574 = vpop.permute.xlu0 %573
        %575 = vrot.lane.b32.xlu0 %v559, 17
        %v576 = vpop.permute.xlu0 %575
        %577 = vrot.lane.b32.xlu0 %v561, 17
        %v578 = vpop.permute.xlu0 %577
        %579 = vrot.lane.b32.xlu0 %v563, 17
        %v580 = vpop.permute.xlu0 %579
        %581 = vrot.lane.b32.xlu0 %v558, 17
        %v582 = vpop.permute.xlu0 %581
        %583 = vrot.lane.b32.xlu0 %v560, 17
        %v584 = vpop.permute.xlu0 %583
        %585 = vrot.lane.b32.xlu0 %v562, 17
        %v586 = vpop.permute.xlu0 %585
        %587 = vrot.lane.b32.xlu0 %v564, 17
        %v588 = vpop.permute.xlu0 %587
        %v589 = vlaneseq
        %v590 = vand.u32 %v589, 127
        %vm591 = vcmp.lt.s32.totalorder %v590, 17
        %v592 = vsel %vm591, %v574, %v582
        %v593 = vsel %vm591, %v576, %v584
        %v594 = vsel %vm591, %v578, %v586
        %v595 = vsel %vm591, %v580, %v588
        %v596 = vsel %vm591, %v582, %v574
        %v597 = vsel %vm591, %v584, %v576
        %v598 = vsel %vm591, %v586, %v578
        %v599 = vsel %vm591, %v588, %v580
        %v600 = vlaneseq
        %v601 = vshrl.u32 %v600, 7
        %v602 = vsub.s32 0, %v601
        %v603 = vrot.slane %v569, %v602
        %v604 = vlaneseq
        %v605 = vshrl.u32 %v604, 7
        %v606 = vsub.s32 0, %v605
        %v607 = vrot.slane %v570, %v606
        %v608 = vmul.f32 %v596, %v603
        %v609 = vmul.f32 %v592, %v607
        %v610 = vmul.f32 %v597, %v603
        %v611 = vmul.f32 %v593, %v607
        %v612 = vmul.f32 %v598, %v603
        %v613 = vmul.f32 %v594, %v607
        %v614 = vmul.f32 %v599, %v603
        %v615 = vmul.f32 %v595, %v607
        %617 = vset.pattern.permute.xlu0 0
        %618 = vperm.xlu0 %617, %v565
        %v619 = vpop.permute.xlu0 %618
        %622 = vset.pattern.permute.xlu0 0
        %623 = vperm.xlu0 %622, %v566
        %v624 = vpop.permute.xlu0 %623
        %627 = vset.pattern.permute.xlu0 0
        %628 = vperm.xlu0 %627, %v567
        %v629 = vpop.permute.xlu0 %628
        %632 = vset.pattern.permute.xlu0 0
        %633 = vperm.xlu0 %632, %v568
        %v634 = vpop.permute.xlu0 %633
        %v636 = vmul.f32 %v608, %v619
        %v637 = vmul.f32 %v609, %v619
        %v638 = vmul.f32 %v610, %v624
        %v639 = vmul.f32 %v611, %v624
        %v640 = vmul.f32 %v612, %v629
        %v641 = vmul.f32 %v613, %v629
        %v642 = vmul.f32 %v614, %v634
        %v643 = vmul.f32 %v615, %v634
        %v644 = vadd.f32 %v636, 0.0
        %v645 = vadd.f32 %v637, 0.0
        %v646 = vadd.f32 %v638, 0.0
        %v647 = vadd.f32 %v639, 0.0
        %v648 = vadd.f32 %v640, 0.0
        %v649 = vadd.f32 %v641, 0.0
        %v650 = vadd.f32 %v642, 0.0
        %v651 = vadd.f32 %v643, 0.0
        %652 = vrot.lane.b32.xlu0 %v557, 16
        %v653 = vpop.permute.xlu0 %652
        %654 = vrot.lane.b32.xlu0 %v559, 16
        %v655 = vpop.permute.xlu0 %654
        %656 = vrot.lane.b32.xlu0 %v561, 16
        %v657 = vpop.permute.xlu0 %656
        %658 = vrot.lane.b32.xlu0 %v563, 16
        %v659 = vpop.permute.xlu0 %658
        %660 = vrot.lane.b32.xlu0 %v558, 16
        %v661 = vpop.permute.xlu0 %660
        %662 = vrot.lane.b32.xlu0 %v560, 16
        %v663 = vpop.permute.xlu0 %662
        %664 = vrot.lane.b32.xlu0 %v562, 16
        %v665 = vpop.permute.xlu0 %664
        %666 = vrot.lane.b32.xlu0 %v564, 16
        %v667 = vpop.permute.xlu0 %666
        %vm668 = vcmp.lt.s32.totalorder %v590, 16
        %v669 = vsel %vm668, %v653, %v661
        %v670 = vsel %vm668, %v655, %v663
        %v671 = vsel %vm668, %v657, %v665
        %v672 = vsel %vm668, %v659, %v667
        %v673 = vsel %vm668, %v661, %v653
        %v674 = vsel %vm668, %v663, %v655
        %v675 = vsel %vm668, %v665, %v657
        %v676 = vsel %vm668, %v667, %v659
        %v677 = vlaneseq
        %v678 = vshrl.u32 %v677, 7
        %v679 = vsub.s32 1, %v678
        %v680 = vrot.slane %v569, %v679
        %v681 = vlaneseq
        %v682 = vshrl.u32 %v681, 7
        %v683 = vsub.s32 1, %v682
        %v684 = vrot.slane %v570, %v683
        %v685 = vmul.f32 %v673, %v680
        %v686 = vmul.f32 %v669, %v684
        %v687 = vmul.f32 %v674, %v680
        %v688 = vmul.f32 %v670, %v684
        %v689 = vmul.f32 %v675, %v680
        %v690 = vmul.f32 %v671, %v684
        %v691 = vmul.f32 %v676, %v680
        %v692 = vmul.f32 %v672, %v684
        %693 = vset.pattern.permute.xlu0 1
        %694 = vperm.xlu0 %693, %v565
        %v695 = vpop.permute.xlu0 %694
        %697 = vset.pattern.permute.xlu0 1
        %698 = vperm.xlu0 %697, %v566
        %v699 = vpop.permute.xlu0 %698
        %701 = vset.pattern.permute.xlu0 1
        %702 = vperm.xlu0 %701, %v567
        %v703 = vpop.permute.xlu0 %702
        %705 = vset.pattern.permute.xlu0 1
        %706 = vperm.xlu0 %705, %v568
        %v707 = vpop.permute.xlu0 %706
        %v709 = vmul.f32 %v685, %v695
        %v710 = vmul.f32 %v686, %v695
        %v711 = vmul.f32 %v687, %v699
        %v712 = vmul.f32 %v688, %v699
        %v713 = vmul.f32 %v689, %v703
        %v714 = vmul.f32 %v690, %v703
        %v715 = vmul.f32 %v691, %v707
        %v716 = vmul.f32 %v692, %v707
        %v717 = vadd.f32 %v644, %v709
        %v718 = vadd.f32 %v645, %v710
        %v719 = vadd.f32 %v646, %v711
        %v720 = vadd.f32 %v647, %v712
        %v721 = vadd.f32 %v648, %v713
        %v722 = vadd.f32 %v649, %v714
        %v723 = vadd.f32 %v650, %v715
        %v724 = vadd.f32 %v651, %v716
        %725 = vrot.lane.b32.xlu0 %v557, 15
        %v726 = vpop.permute.xlu0 %725
        %727 = vrot.lane.b32.xlu0 %v559, 15
        %v728 = vpop.permute.xlu0 %727
        %729 = vrot.lane.b32.xlu0 %v561, 15
        %v730 = vpop.permute.xlu0 %729
        %731 = vrot.lane.b32.xlu0 %v563, 15
        %v732 = vpop.permute.xlu0 %731
        %733 = vrot.lane.b32.xlu0 %v558, 15
        %v734 = vpop.permute.xlu0 %733
        %735 = vrot.lane.b32.xlu0 %v560, 15
        %v736 = vpop.permute.xlu0 %735
        %737 = vrot.lane.b32.xlu0 %v562, 15
        %v738 = vpop.permute.xlu0 %737
        %739 = vrot.lane.b32.xlu0 %v564, 15
        %v740 = vpop.permute.xlu0 %739
        %vm741 = vcmp.lt.s32.totalorder %v590, 15
        %v742 = vsel %vm741, %v726, %v734
        %v743 = vsel %vm741, %v728, %v736
        %v744 = vsel %vm741, %v730, %v738
        %v745 = vsel %vm741, %v732, %v740
        %v746 = vsel %vm741, %v734, %v726
        %v747 = vsel %vm741, %v736, %v728
        %v748 = vsel %vm741, %v738, %v730
        %v749 = vsel %vm741, %v740, %v732
        %v750 = vlaneseq
        %v751 = vshrl.u32 %v750, 7
        %v752 = vsub.s32 2, %v751
        %v753 = vrot.slane %v569, %v752
        %v754 = vlaneseq
        %v755 = vshrl.u32 %v754, 7
        %v756 = vsub.s32 2, %v755
        %v757 = vrot.slane %v570, %v756
        %v758 = vmul.f32 %v746, %v753
        %v759 = vmul.f32 %v742, %v757
        %v760 = vmul.f32 %v747, %v753
        %v761 = vmul.f32 %v743, %v757
        %v762 = vmul.f32 %v748, %v753
        %v763 = vmul.f32 %v744, %v757
        %v764 = vmul.f32 %v749, %v753
        %v765 = vmul.f32 %v745, %v757
        %766 = vset.pattern.permute.xlu0 2
        %767 = vperm.xlu0 %766, %v565
        %v768 = vpop.permute.xlu0 %767
        %770 = vset.pattern.permute.xlu0 2
        %771 = vperm.xlu0 %770, %v566
        %v772 = vpop.permute.xlu0 %771
        %774 = vset.pattern.permute.xlu0 2
        %775 = vperm.xlu0 %774, %v567
        %v776 = vpop.permute.xlu0 %775
        %778 = vset.pattern.permute.xlu0 2
        %779 = vperm.xlu0 %778, %v568
        %v780 = vpop.permute.xlu0 %779
        %v782 = vmul.f32 %v758, %v768
        %v783 = vmul.f32 %v759, %v768
        %v784 = vmul.f32 %v760, %v772
        %v785 = vmul.f32 %v761, %v772
        %v786 = vmul.f32 %v762, %v776
        %v787 = vmul.f32 %v763, %v776
        %v788 = vmul.f32 %v764, %v780
        %v789 = vmul.f32 %v765, %v780
        %v790 = vadd.f32 %v717, %v782
        %v791 = vadd.f32 %v718, %v783
        %v792 = vadd.f32 %v719, %v784
        %v793 = vadd.f32 %v720, %v785
        %v794 = vadd.f32 %v721, %v786
        %v795 = vadd.f32 %v722, %v787
        %v796 = vadd.f32 %v723, %v788
        %v797 = vadd.f32 %v724, %v789
        %798 = vrot.lane.b32.xlu0 %v557, 1
        %v799 = vpop.permute.xlu0 %798
        %800 = vrot.lane.b32.xlu0 %v559, 1
        %v801 = vpop.permute.xlu0 %800
        %802 = vrot.lane.b32.xlu0 %v561, 1
        %v803 = vpop.permute.xlu0 %802
        %804 = vrot.lane.b32.xlu0 %v563, 1
        %v805 = vpop.permute.xlu0 %804
        %806 = vrot.lane.b32.xlu0 %v558, 1
        %v807 = vpop.permute.xlu0 %806
        %808 = vrot.lane.b32.xlu0 %v560, 1
        %v809 = vpop.permute.xlu0 %808
        %810 = vrot.lane.b32.xlu0 %v562, 1
        %v811 = vpop.permute.xlu0 %810
        %812 = vrot.lane.b32.xlu0 %v564, 1
        %v813 = vpop.permute.xlu0 %812
        %vm814 = vcmp.lt.s32.totalorder %v590, 1
        %v815 = vsel %vm814, %v799, %v807
        %v816 = vsel %vm814, %v801, %v809
        %v817 = vsel %vm814, %v803, %v811
        %v818 = vsel %vm814, %v805, %v813
        %v819 = vsel %vm814, %v807, %v799
        %v820 = vsel %vm814, %v809, %v801
        %v821 = vsel %vm814, %v811, %v803
        %v822 = vsel %vm814, %v813, %v805
        %v823 = vlaneseq
        %v824 = vshrl.u32 %v823, 7
        %v825 = vsub.s32 3, %v824
        %v826 = vrot.slane %v569, %v825
        %v827 = vlaneseq
        %v828 = vshrl.u32 %v827, 7
        %v829 = vsub.s32 3, %v828
        %v830 = vrot.slane %v570, %v829
        %v831 = vmul.f32 %v819, %v826
        %v832 = vmul.f32 %v815, %v830
        %v833 = vmul.f32 %v820, %v826
        %v834 = vmul.f32 %v816, %v830
        %v835 = vmul.f32 %v821, %v826
        %v836 = vmul.f32 %v817, %v830
        %v837 = vmul.f32 %v822, %v826
        %v838 = vmul.f32 %v818, %v830
        %839 = vset.pattern.permute.xlu0 3
        %840 = vperm.xlu0 %839, %v565
        %v841 = vpop.permute.xlu0 %840
        %843 = vset.pattern.permute.xlu0 3
        %844 = vperm.xlu0 %843, %v566
        %v845 = vpop.permute.xlu0 %844
        %847 = vset.pattern.permute.xlu0 3
        %848 = vperm.xlu0 %847, %v567
        %v849 = vpop.permute.xlu0 %848
        %851 = vset.pattern.permute.xlu0 3
        %852 = vperm.xlu0 %851, %v568
        %v853 = vpop.permute.xlu0 %852
        %v855 = vmul.f32 %v831, %v841
        %v856 = vmul.f32 %v832, %v841
        %v857 = vmul.f32 %v833, %v845
        %v858 = vmul.f32 %v834, %v845
        %v859 = vmul.f32 %v835, %v849
        %v860 = vmul.f32 %v836, %v849
        %v861 = vmul.f32 %v837, %v853
        %v862 = vmul.f32 %v838, %v853
        %v863 = vadd.f32 %v790, %v855
        %v864 = vadd.f32 %v791, %v856
        %v865 = vadd.f32 %v792, %v857
        %v866 = vadd.f32 %v793, %v858
        %v867 = vadd.f32 %v794, %v859
        %v868 = vadd.f32 %v795, %v860
        %v869 = vadd.f32 %v796, %v861
        %v870 = vadd.f32 %v797, %v862
        %871 = vset.pattern.permute.xlu0 4
        %872 = vperm.xlu0 %871, %v565
        %v873 = vpop.permute.xlu0 %872
        %875 = vset.pattern.permute.xlu0 4
        %876 = vperm.xlu0 %875, %v566
        %v877 = vpop.permute.xlu0 %876
        %879 = vset.pattern.permute.xlu0 4
        %880 = vperm.xlu0 %879, %v567
        %v881 = vpop.permute.xlu0 %880
        %883 = vset.pattern.permute.xlu0 4
        %884 = vperm.xlu0 %883, %v568
        %v885 = vpop.permute.xlu0 %884
        %v887 = vmul.f32 %v557, %v873
        %v888 = vmul.f32 %v558, %v873
        %v889 = vmul.f32 %v559, %v877
        %v890 = vmul.f32 %v560, %v877
        %v891 = vmul.f32 %v561, %v881
        %v892 = vmul.f32 %v562, %v881
        %v893 = vmul.f32 %v563, %v885
        %v894 = vmul.f32 %v564, %v885
        %v895 = vadd.f32 %v863, %v887
        %v896 = vadd.f32 %v864, %v888
        %v897 = vadd.f32 %v865, %v889
        %v898 = vadd.f32 %v866, %v890
        %v899 = vadd.f32 %v867, %v891
        %v900 = vadd.f32 %v868, %v892
        %v901 = vadd.f32 %v869, %v893
        %v902 = vadd.f32 %v870, %v894
        %903 = vrot.lane.b32.xlu0 %v557, 127
        %v904 = vpop.permute.xlu0 %903
        %905 = vrot.lane.b32.xlu0 %v559, 127
        %v906 = vpop.permute.xlu0 %905
        %907 = vrot.lane.b32.xlu0 %v561, 127
        %v908 = vpop.permute.xlu0 %907
        %909 = vrot.lane.b32.xlu0 %v563, 127
        %v910 = vpop.permute.xlu0 %909
        %911 = vrot.lane.b32.xlu0 %v558, 127
        %v912 = vpop.permute.xlu0 %911
        %913 = vrot.lane.b32.xlu0 %v560, 127
        %v914 = vpop.permute.xlu0 %913
        %915 = vrot.lane.b32.xlu0 %v562, 127
        %v916 = vpop.permute.xlu0 %915
        %917 = vrot.lane.b32.xlu0 %v564, 127
        %v918 = vpop.permute.xlu0 %917
        %vm919 = vcmp.lt.s32.totalorder %v590, 127
        %v920 = vsel %vm919, %v904, %v912
        %v921 = vsel %vm919, %v906, %v914
        %v922 = vsel %vm919, %v908, %v916
        %v923 = vsel %vm919, %v910, %v918
        %v924 = vsel %vm919, %v912, %v904
        %v925 = vsel %vm919, %v914, %v906
        %v926 = vsel %vm919, %v916, %v908
        %v927 = vsel %vm919, %v918, %v910
        %v928 = vlaneseq
        %v929 = vshrl.u32 %v928, 7
        %v930 = vsub.s32 5, %v929
        %v931 = vrot.slane %v569, %v930
        %v932 = vlaneseq
        %v933 = vshrl.u32 %v932, 7
        %v934 = vsub.s32 5, %v933
        %v935 = vrot.slane %v570, %v934
        %v936 = vmul.f32 %v920, %v931
        %v937 = vmul.f32 %v924, %v935
        %v938 = vmul.f32 %v921, %v931
        %v939 = vmul.f32 %v925, %v935
        %v940 = vmul.f32 %v922, %v931
        %v941 = vmul.f32 %v926, %v935
        %v942 = vmul.f32 %v923, %v931
        %v943 = vmul.f32 %v927, %v935
        %944 = vset.pattern.permute.xlu0 5
        %945 = vperm.xlu0 %944, %v565
        %v946 = vpop.permute.xlu0 %945
        %948 = vset.pattern.permute.xlu0 5
        %949 = vperm.xlu0 %948, %v566
        %v950 = vpop.permute.xlu0 %949
        %952 = vset.pattern.permute.xlu0 5
        %953 = vperm.xlu0 %952, %v567
        %v954 = vpop.permute.xlu0 %953
        %956 = vset.pattern.permute.xlu0 5
        %957 = vperm.xlu0 %956, %v568
        %v958 = vpop.permute.xlu0 %957
        %v960 = vmul.f32 %v936, %v946
        %v961 = vmul.f32 %v937, %v946
        %v962 = vmul.f32 %v938, %v950
        %v963 = vmul.f32 %v939, %v950
        %v964 = vmul.f32 %v940, %v954
        %v965 = vmul.f32 %v941, %v954
        %v966 = vmul.f32 %v942, %v958
        %v967 = vmul.f32 %v943, %v958
        %v968 = vadd.f32 %v895, %v960
        %v969 = vadd.f32 %v896, %v961
        %v970 = vadd.f32 %v897, %v962
        %v971 = vadd.f32 %v898, %v963
        %v972 = vadd.f32 %v899, %v964
        %v973 = vadd.f32 %v900, %v965
        %v974 = vadd.f32 %v901, %v966
        %v975 = vadd.f32 %v902, %v967
        %976 = vrot.lane.b32.xlu0 %v557, 113
        %v977 = vpop.permute.xlu0 %976
        %978 = vrot.lane.b32.xlu0 %v559, 113
        %v979 = vpop.permute.xlu0 %978
        %980 = vrot.lane.b32.xlu0 %v561, 113
        %v981 = vpop.permute.xlu0 %980
        %982 = vrot.lane.b32.xlu0 %v563, 113
        %v983 = vpop.permute.xlu0 %982
        %984 = vrot.lane.b32.xlu0 %v558, 113
        %v985 = vpop.permute.xlu0 %984
        %986 = vrot.lane.b32.xlu0 %v560, 113
        %v987 = vpop.permute.xlu0 %986
        %988 = vrot.lane.b32.xlu0 %v562, 113
        %v989 = vpop.permute.xlu0 %988
        %990 = vrot.lane.b32.xlu0 %v564, 113
        %v991 = vpop.permute.xlu0 %990
        %vm992 = vcmp.lt.s32.totalorder %v590, 113
        %v993 = vsel %vm992, %v977, %v985
        %v994 = vsel %vm992, %v979, %v987
        %v995 = vsel %vm992, %v981, %v989
        %v996 = vsel %vm992, %v983, %v991
        %v997 = vsel %vm992, %v985, %v977
        %v998 = vsel %vm992, %v987, %v979
        %v999 = vsel %vm992, %v989, %v981
        %v1000 = vsel %vm992, %v991, %v983
        %v1001 = vlaneseq
        %v1002 = vshrl.u32 %v1001, 7
        %v1003 = vsub.s32 6, %v1002
        %v1004 = vrot.slane %v569, %v1003
        %v1005 = vlaneseq
        %v1006 = vshrl.u32 %v1005, 7
        %v1007 = vsub.s32 6, %v1006
        %v1008 = vrot.slane %v570, %v1007
        %v1009 = vmul.f32 %v993, %v1004
        %v1010 = vmul.f32 %v997, %v1008
        %v1011 = vmul.f32 %v994, %v1004
        %v1012 = vmul.f32 %v998, %v1008
        %v1013 = vmul.f32 %v995, %v1004
        %v1014 = vmul.f32 %v999, %v1008
        %v1015 = vmul.f32 %v996, %v1004
        %v1016 = vmul.f32 %v1000, %v1008
        %1017 = vset.pattern.permute.xlu0 6
        %1018 = vperm.xlu0 %1017, %v565
        %v1019 = vpop.permute.xlu0 %1018
        %1021 = vset.pattern.permute.xlu0 6
        %1022 = vperm.xlu0 %1021, %v566
        %v1023 = vpop.permute.xlu0 %1022
        %1025 = vset.pattern.permute.xlu0 6
        %1026 = vperm.xlu0 %1025, %v567
        %v1027 = vpop.permute.xlu0 %1026
        %1029 = vset.pattern.permute.xlu0 6
        %1030 = vperm.xlu0 %1029, %v568
        %v1031 = vpop.permute.xlu0 %1030
        %v1033 = vmul.f32 %v1009, %v1019
        %v1034 = vmul.f32 %v1010, %v1019
        %v1035 = vmul.f32 %v1011, %v1023
        %v1036 = vmul.f32 %v1012, %v1023
        %v1037 = vmul.f32 %v1013, %v1027
        %v1038 = vmul.f32 %v1014, %v1027
        %v1039 = vmul.f32 %v1015, %v1031
        %v1040 = vmul.f32 %v1016, %v1031
        %v1041 = vadd.f32 %v968, %v1033
        %v1042 = vadd.f32 %v969, %v1034
        %v1043 = vadd.f32 %v970, %v1035
        %v1044 = vadd.f32 %v971, %v1036
        %v1045 = vadd.f32 %v972, %v1037
        %v1046 = vadd.f32 %v973, %v1038
        %v1047 = vadd.f32 %v974, %v1039
        %v1048 = vadd.f32 %v975, %v1040
        %1049 = vrot.lane.b32.xlu0 %v557, 112
        %v1050 = vpop.permute.xlu0 %1049
        %1051 = vrot.lane.b32.xlu0 %v559, 112
        %v1052 = vpop.permute.xlu0 %1051
        %1053 = vrot.lane.b32.xlu0 %v561, 112
        %v1054 = vpop.permute.xlu0 %1053
        %1055 = vrot.lane.b32.xlu0 %v563, 112
        %v1056 = vpop.permute.xlu0 %1055
        %1057 = vrot.lane.b32.xlu0 %v558, 112
        %v1058 = vpop.permute.xlu0 %1057
        %1059 = vrot.lane.b32.xlu0 %v560, 112
        %v1060 = vpop.permute.xlu0 %1059
        %1061 = vrot.lane.b32.xlu0 %v562, 112
        %v1062 = vpop.permute.xlu0 %1061
        %1063 = vrot.lane.b32.xlu0 %v564, 112
        %v1064 = vpop.permute.xlu0 %1063
        %vm1065 = vcmp.lt.s32.totalorder %v590, 112
        %v1066 = vsel %vm1065, %v1050, %v1058
        %v1067 = vsel %vm1065, %v1052, %v1060
        %v1068 = vsel %vm1065, %v1054, %v1062
        %v1069 = vsel %vm1065, %v1056, %v1064
        %v1070 = vsel %vm1065, %v1058, %v1050
        %v1071 = vsel %vm1065, %v1060, %v1052
        %v1072 = vsel %vm1065, %v1062, %v1054
        %v1073 = vsel %vm1065, %v1064, %v1056
        %v1074 = vlaneseq
        %v1075 = vshrl.u32 %v1074, 7
        %v1076 = vsub.s32 7, %v1075
        %v1077 = vrot.slane %v569, %v1076
        %v1078 = vlaneseq
        %v1079 = vshrl.u32 %v1078, 7
        %v1080 = vsub.s32 7, %v1079
        %v1081 = vrot.slane %v570, %v1080
        %v1082 = vmul.f32 %v1066, %v1077
        %v1083 = vmul.f32 %v1070, %v1081
        %v1084 = vmul.f32 %v1067, %v1077
        %v1085 = vmul.f32 %v1071, %v1081
        %v1086 = vmul.f32 %v1068, %v1077
        %v1087 = vmul.f32 %v1072, %v1081
        %v1088 = vmul.f32 %v1069, %v1077
        %v1089 = vmul.f32 %v1073, %v1081
        %1090 = vset.pattern.permute.xlu0 7
        %1091 = vperm.xlu0 %1090, %v565
        %v1092 = vpop.permute.xlu0 %1091
        %1094 = vset.pattern.permute.xlu0 7
        %1095 = vperm.xlu0 %1094, %v566
        %v1096 = vpop.permute.xlu0 %1095
        %1098 = vset.pattern.permute.xlu0 7
        %1099 = vperm.xlu0 %1098, %v567
        %v1100 = vpop.permute.xlu0 %1099
        %1102 = vset.pattern.permute.xlu0 7
        %1103 = vperm.xlu0 %1102, %v568
        %v1104 = vpop.permute.xlu0 %1103
        %v1106 = vmul.f32 %v1082, %v1092
        %v1107 = vmul.f32 %v1083, %v1092
        %v1108 = vmul.f32 %v1084, %v1096
        %v1109 = vmul.f32 %v1085, %v1096
        %v1110 = vmul.f32 %v1086, %v1100
        %v1111 = vmul.f32 %v1087, %v1100
        %v1112 = vmul.f32 %v1088, %v1104
        %v1113 = vmul.f32 %v1089, %v1104
        %v1114 = vadd.f32 %v1041, %v1106
        %v1115 = vadd.f32 %v1042, %v1107
        %v1116 = vadd.f32 %v1043, %v1108
        %v1117 = vadd.f32 %v1044, %v1109
        %v1118 = vadd.f32 %v1045, %v1110
        %v1119 = vadd.f32 %v1046, %v1111
        %v1120 = vadd.f32 %v1047, %v1112
        %v1121 = vadd.f32 %v1048, %v1113
        %1122 = vrot.lane.b32.xlu0 %v557, 111
        %v1123 = vpop.permute.xlu0 %1122
        %1124 = vrot.lane.b32.xlu0 %v559, 111
        %v1125 = vpop.permute.xlu0 %1124
        %1126 = vrot.lane.b32.xlu0 %v561, 111
        %v1127 = vpop.permute.xlu0 %1126
        %1128 = vrot.lane.b32.xlu0 %v563, 111
        %v1129 = vpop.permute.xlu0 %1128
        %1130 = vrot.lane.b32.xlu0 %v558, 111
        %v1131 = vpop.permute.xlu0 %1130
        %1132 = vrot.lane.b32.xlu0 %v560, 111
        %v1133 = vpop.permute.xlu0 %1132
        %1134 = vrot.lane.b32.xlu0 %v562, 111
        %v1135 = vpop.permute.xlu0 %1134
        %1136 = vrot.lane.b32.xlu0 %v564, 111
        %v1137 = vpop.permute.xlu0 %1136
        %vm1138 = vcmp.lt.s32.totalorder %v590, 111
        %v1139 = vsel %vm1138, %v1123, %v1131
        %v1140 = vsel %vm1138, %v1125, %v1133
        %v1141 = vsel %vm1138, %v1127, %v1135
        %v1142 = vsel %vm1138, %v1129, %v1137
        %v1143 = vsel %vm1138, %v1131, %v1123
        %v1144 = vsel %vm1138, %v1133, %v1125
        %v1145 = vsel %vm1138, %v1135, %v1127
        %v1146 = vsel %vm1138, %v1137, %v1129
        %v1147 = vlaneseq
        %v1148 = vshrl.u32 %v1147, 7
        %v1149 = vsub.s32 0, %v1148
        %v1150 = vrot.slane %v571, %v1149
        %v1151 = vlaneseq
        %v1152 = vshrl.u32 %v1151, 7
        %v1153 = vsub.s32 0, %v1152
        %v1154 = vrot.slane %v572, %v1153
        %v1155 = vmul.f32 %v1139, %v1150
        %v1156 = vmul.f32 %v1143, %v1154
        %v1157 = vmul.f32 %v1140, %v1150
        %v1158 = vmul.f32 %v1144, %v1154
        %v1159 = vmul.f32 %v1141, %v1150
        %v1160 = vmul.f32 %v1145, %v1154
        %v1161 = vmul.f32 %v1142, %v1150
        %v1162 = vmul.f32 %v1146, %v1154
        %1163 = vset.pattern.permute.xlu0 8
        %1164 = vperm.xlu0 %1163, %v565
        %v1165 = vpop.permute.xlu0 %1164
        %1167 = vset.pattern.permute.xlu0 8
        %1168 = vperm.xlu0 %1167, %v566
        %v1169 = vpop.permute.xlu0 %1168
        %1171 = vset.pattern.permute.xlu0 8
        %1172 = vperm.xlu0 %1171, %v567
        %v1173 = vpop.permute.xlu0 %1172
        %1175 = vset.pattern.permute.xlu0 8
        %1176 = vperm.xlu0 %1175, %v568
        %v1177 = vpop.permute.xlu0 %1176
        %v1179 = vmul.f32 %v1155, %v1165
        %v1180 = vmul.f32 %v1156, %v1165
        %v1181 = vmul.f32 %v1157, %v1169
        %v1182 = vmul.f32 %v1158, %v1169
        %v1183 = vmul.f32 %v1159, %v1173
        %v1184 = vmul.f32 %v1160, %v1173
        %v1185 = vmul.f32 %v1161, %v1177
        %v1186 = vmul.f32 %v1162, %v1177
        %v1187 = vadd.f32 %v1114, %v1179
        %v1188 = vadd.f32 %v1115, %v1180
        %v1189 = vadd.f32 %v1116, %v1181
        %v1190 = vadd.f32 %v1117, %v1182
        %v1191 = vadd.f32 %v1118, %v1183
        %v1192 = vadd.f32 %v1119, %v1184
        %v1193 = vadd.f32 %v1120, %v1185
        %v1194 = vadd.f32 %v1121, %v1186
        %v1195 = vld [vmem:[%s6] sm:$0xff]
        %v1196 = vld [vmem:[%s6 + $0x8] sm:$0xff]
        %v1197 = vld [vmem:[%s6 + $0x10] sm:$0xff]
        %v1198 = vld [vmem:[%s6 + $0x18] sm:$0xff]
        %1200 = vset.pattern.permute.xlu0 0
        %1201 = vperm.xlu0 %1200, %v1195
        %v1202 = vpop.permute.xlu0 %1201
        %1205 = vset.pattern.permute.xlu0 0
        %1206 = vperm.xlu0 %1205, %v1196
        %v1207 = vpop.permute.xlu0 %1206
        %1210 = vset.pattern.permute.xlu0 0
        %1211 = vperm.xlu0 %1210, %v1197
        %v1212 = vpop.permute.xlu0 %1211
        %1215 = vset.pattern.permute.xlu0 0
        %1216 = vperm.xlu0 %1215, %v1198
        %v1217 = vpop.permute.xlu0 %1216
        %v1219 = vmul.f32 %v1187, %v1202
        %v1220 = vmul.f32 %v1188, %v1202
        %v1221 = vmul.f32 %v1189, %v1207
        %v1222 = vmul.f32 %v1190, %v1207
        %v1223 = vmul.f32 %v1191, %v1212
        %v1224 = vmul.f32 %v1192, %v1212
        %v1225 = vmul.f32 %v1193, %v1217
        %v1226 = vmul.f32 %v1194, %v1217
        %v1227 = vld [vmem:[%s7] sm:$0xff]
        %v1228 = vld [vmem:[%s7 + $0x8] sm:$0xff]
        %v1229 = vld [vmem:[%s7 + $0x10] sm:$0xff]
        %v1230 = vld [vmem:[%s7 + $0x18] sm:$0xff]
        %1232 = vset.pattern.permute.xlu0 0
        %1233 = vperm.xlu0 %1232, %v1227
        %v1234 = vpop.permute.xlu0 %1233
        %1237 = vset.pattern.permute.xlu0 0
        %1238 = vperm.xlu0 %1237, %v1228
        %v1239 = vpop.permute.xlu0 %1238
        %1242 = vset.pattern.permute.xlu0 0
        %1243 = vperm.xlu0 %1242, %v1229
        %v1244 = vpop.permute.xlu0 %1243
        %1247 = vset.pattern.permute.xlu0 0
        %1248 = vperm.xlu0 %1247, %v1230
        %v1249 = vpop.permute.xlu0 %1248
        %v1251 = vadd.f32 %v1219, %v1234
        %v1252 = vadd.f32 %v1220, %v1234
        %v1253 = vadd.f32 %v1221, %v1239
        %v1254 = vadd.f32 %v1222, %v1239
        %v1255 = vadd.f32 %v1223, %v1244
        %v1256 = vadd.f32 %v1224, %v1244
        %v1257 = vadd.f32 %v1225, %v1249
        %v1258 = vadd.f32 %v1226, %v1249
        %v1259 = vmax.f32 %v1251, 0.0
        %v1260 = vmax.f32 %v1252, 0.0
        %v1261 = vmax.f32 %v1253, 0.0
        %v1262 = vmax.f32 %v1254, 0.0
        %v1263 = vmax.f32 %v1255, 0.0
        %v1264 = vmax.f32 %v1256, 0.0
        %v1265 = vmax.f32 %v1257, 0.0
        %v1266 = vmax.f32 %v1258, 0.0
        %v1267 = vld [vmem:[%s8] sm:$0xff]
        %vm1268 = vcmask 261120
        %v1270 = vsel %vm1268, %v1267, 0
        %1272 = vmatprep.subr.mxu0 %v1260
        %1273 = vmatpush1.msra.mxu0 %v1259
        %1274 = vmatprep.subr.mxu0 %v1262
        %1275 = vmatpush1.msra.mxu0 %v1261
        %1276 = vmatprep.subr.mxu0 %v1264
        %1277 = vmatpush1.msra.mxu0 %v1263
        %1278 = vmatprep.subr.mxu0 %v1266
        %1279 = vmatpush1.msra.mxu0 %v1265
        %1280 = vmatprep.subr.mxu0 0.0
        %1281 = vmatpush1.msra.mxu0 0.0
        %1282 = vmatprep.subr.mxu0 0.0
        %1283 = vmatpush1.msra.mxu0 0.0
        %1284 = vmatprep.subr.mxu0 0.0
        %1285 = vmatpush1.msra.mxu0 0.0
        %1286 = vmatprep.subr.mxu0 0.0
        %1287 = vmatpush1.msra.mxu0 0.0
        %1288 = vmatprep.subr.mxu0 0.0
        %1289 = vmatpush1.msra.mxu0 0.0
        %1290 = vmatprep.subr.mxu0 0.0
        %1291 = vmatpush1.msra.mxu0 0.0
        %1292 = vmatprep.subr.mxu0 0.0
        %1293 = vmatpush1.msra.mxu0 0.0
        %1294 = vmatprep.subr.mxu0 0.0
        %1295 = vmatpush1.msra.mxu0 0.0
        %1296 = vmatprep.subr.mxu0 0.0
        %1297 = vmatpush1.msra.mxu0 0.0
        %1298 = vmatprep.subr.mxu0 0.0
        %1299 = vmatpush1.msra.mxu0 0.0
        %1300 = vmatprep.subr.mxu0 0.0
        %1301 = vmatpush1.msra.mxu0 0.0
        %1302 = vmatprep.subr.mxu0 0.0
        %1303 = vmatpush1.msra.mxu0 0.0
        %1304 = vmatprep.subr.mxu0 0.0
        %1305 = vmatpush1.msra.mxu0 0.0
        %1306 = vmatprep.subr.mxu0 0.0
        %1307 = vmatpush1.msra.mxu0 0.0
        %1308 = vmatprep.subr.mxu0 0.0
        %1309 = vmatpush1.msra.mxu0 0.0
        %1310 = vmatprep.subr.mxu0 0.0
        %1311 = vmatpush1.msra.mxu0 0.0
        %1312 = vmatprep.subr.mxu0 0.0
        %1313 = vmatpush1.msra.mxu0 0.0
        %1314 = vmatprep.subr.mxu0 0.0
        %1315 = vmatpush1.msra.mxu0 0.0
        %1316 = vmatprep.subr.mxu0 0.0
        %1317 = vmatpush1.msra.mxu0 0.0
        %1318 = vmatprep.subr.mxu0 0.0
        %1319 = vmatpush1.msra.mxu0 0.0
        %1320 = vmatprep.subr.mxu0 0.0
        %1321 = vmatpush1.msra.mxu0 0.0
        %1322 = vmatprep.subr.mxu0 0.0
        %1323 = vmatpush1.msra.mxu0 0.0
        %1324 = vmatprep.subr.mxu0 0.0
        %1325 = vmatpush1.msra.mxu0 0.0
        %1326 = vmatprep.subr.mxu0 0.0
        %1327 = vmatpush1.msra.mxu0 0.0
        %1328 = vmatprep.subr.mxu0 0.0
        %1329 = vmatpush1.msra.mxu0 0.0
        %1330 = vmatprep.subr.mxu0 0.0
        %1331 = vmatpush1.msra.mxu0 0.0
        %1332 = vmatprep.subr.mxu0 0.0
        %1333 = vmatpush1.msra.mxu0 0.0
        %1334 = vmatprep.subr.mxu0 0.0
        %1335 = vmatpush1.msra.mxu0 0.0
        %1336 = vmatprep.mubr.f32.mxu0 0.0
        %1337 = vmatmul.mubr.f32.gmra.mrb[0].mxu0 %v1270
        %v1338 = vpop.f32.mrb[0].mxu0
        %v1339 = vadd.f32 0.0, %v1338
        %v1340 = vpop.f32.mrb[0].mxu0
        %v1341 = vadd.f32 0.0, %v1340
        %1342 = vdwg.mxu0
        %v1343 = vld [vmem:[%s9] sm:$0xff]
        %1345 = vset.pattern.permute.xlu0 0
        %1346 = vperm.xlu0 %1345, %v1343
        %v1347 = vpop.permute.xlu0 %1346
        %v1349 = vmul.f32 %v1339, %v1347
        %v1350 = vmul.f32 %v1341, %v1347
        %v1351 = vld [vmem:[%s10] sm:$0xff]
        %1353 = vset.pattern.permute.xlu0 0
        %1354 = vperm.xlu0 %1353, %v1351
        %v1355 = vpop.permute.xlu0 %1354
        %v1357 = vadd.f32 %v1349, %v1355
        %v1358 = vadd.f32 %v1350, %v1355
        %v1359 = vadd.f32 %v1357, %v385
        %v1360 = vadd.f32 %v1358, %v386
        %1361 = vst [vmem:[%s379] sm:$0xff] %v1359
        %1362 = vst [vmem:[%s379 + $0x8] sm:$0xff] %v1360
        %s1363 = sand.u32 %s269, 1
        %s1364 = scalar_lea.sflag [#allocation3], %s1363
        %s1365 = sand.u32 %s269, 1
        %s1366 = smul.addr %s1365, 16
        %s1367 = scalar_lea.vmem [#allocation2], %s1366
        // Predicated region
        $region65: #{tpu_custom_call.1} parent=63 // pred_check
          %p1368 = pneg %p279
        $region66: #{tpu_custom_call.1} parent=63 // pred_check_branch
          %1370 = sbr.rel (%p1368) target = $region68
        $region67: #{tpu_custom_call.1} parent=63 // pred_region
          %s1372 = ssub.s32 256, 256
          %1373 = vsyncadd %s1364, %s1372
          %s1374 = smul.addr %s25, 2
          %s1375 = smul.addr %s1374, 128
          %s1376 = scalar_lea.hbm %s11, %s1375
          %s1378 = sshll.u32 %s1367, 4
          %s1379 = int_to_ptr.vmem [resolvable:$true] %s1378
          %1381 = dma.vmem_to_hbm [thread:$0]  %s1379, 256, %s1376, %s1364
        $region68: #{tpu_custom_call.1} parent=63 // pred_fallthru
          _
      $region64: #{tpu_custom_call.1} parent=5 // pred_fallthru
        _
      %p1382 = scmp.le.s32.totalorder 2, %s20
      // Predicated region
      $region69: #{tpu_custom_call.1} parent=5 // pred_check
        %p1383 = pneg %p1382
      $region70: #{tpu_custom_call.1} parent=5 // pred_check_branch
        %1385 = sbr.rel (%p1383) target = $region72
      $region71: #{tpu_custom_call.1} parent=5 // pred_region
        %s1386 = ssub.s32 %s20, 2
        // Predicated region
        $region73: #{tpu_custom_call.1} parent=71 // pred_check
          %p1387 = pneg %p285
        $region74: #{tpu_custom_call.1} parent=71 // pred_check_branch
          %1389 = sbr.rel (%p1387) target = $region76
        $region75: #{tpu_custom_call.1} parent=71 // pred_region
          %s1390 = sand.u32 %s270, 1
          %s1391 = scalar_lea.sflag [#allocation3], %s1390
          %s1392 = sand.u32 %s270, 1
          %s1393 = smul.addr %s1392, 16
          %s1394 = scalar_lea.vmem [#allocation2], %s1393
          %1395 = dma.done %s1391, 256
        $region76: #{tpu_custom_call.1} parent=71 // pred_fallthru
          _
      $region72: #{tpu_custom_call.1} parent=5 // pred_fallthru
        _
    $region6: #{tpu_custom_call.1} parent=1 // loop_footer
      %s24 = sadd.s32 1, %s20
    $region7: #{tpu_custom_call.1} parent=1 // loop_footer_branch
      %19 = sbr.rel target = $region3
    $region8: #{tpu_custom_call.1} parent=1 // loop_exit
      _
    %1396 = vsyncpa [#allocation3], 1
    %s1397 = scalar_lea.sflag [#allocation3], 1
    %1398 = vsyncpa %s1397, 1

</llo_original>
